<compile_context>
chip_gen: v6e
topology: v6e:2x2x1
jax: 0.10.0
libtpu: 0.0.40
codegen_flags: <defaults>
</compile_context>

<pallas_src>
import functools

import jax
import jax.numpy as jnp
from jax import lax
from jax.experimental import pallas as pl
from jax.experimental.pallas import tpu as pltpu

HP = 128                      # lane-dense padded width for hidden / out dims
_F32 = jnp.float32
_BF16 = jnp.bfloat16

_VMEM = functools.partial(pl.BlockSpec, memory_space=pltpu.MemorySpace.VMEM)
_CPARAMS = pltpu.CompilerParams(vmem_limit_bytes=64 * 1024 * 1024)


# --------------------------- small helpers ----------------------------------

def _pad2(x, rows, cols):
    return jnp.pad(x, ((0, rows - x.shape[0]), (0, cols - x.shape[1])))


def _pad_row(v, cols):
    v = v.reshape(1, -1)
    return jnp.pad(v, ((0, 0), (0, cols - v.shape[1])))


def _lane_mask(width, valid):
    return lax.broadcasted_iota(jnp.int32, (1, width), 1) < valid


def _layernorm_relu(x, g, b, mask, valid):
    """Masked LayerNorm (+ReLU) over the first `valid` lanes; padded lanes -> 0."""
    inv = 1.0 / float(valid)
    mu = jnp.sum(x, axis=-1, keepdims=True) * inv
    xc = jnp.where(mask, x - mu, 0.0)
    var = jnp.sum(xc * xc, axis=-1, keepdims=True) * inv
    y = xc * lax.rsqrt(var + 1e-5) * g + b          # g,b are zero in padded lanes
    return jnp.maximum(y, 0.0)


# --------------------------- kernel 1: input Linears -------------------------

def _make_embed_kernel(row_ranges):
    def kernel(*refs):
        o_ref = refs[-1]
        for t, (start, size) in enumerate(row_ranges):
            x = refs[3 * t][...].astype(_BF16)       # (n_t, HP) lane-dense
            w = refs[3 * t + 1][...]                 # bf16 (HP, HP)
            b = refs[3 * t + 2][...]                 # f32  (1, HP)
            y = jnp.dot(x, w, preferred_element_type=_F32) + b
            o_ref[start:start + size, :] = y.astype(o_ref.dtype)
    return kernel


def embed_nodes(x_list, w_list, b_list, row_ranges, num_nodes):
    inputs = []
    for x, w, b in zip(x_list, w_list, b_list):
        inputs.extend([x, w, b])
    return pl.pallas_call(
        _make_embed_kernel(tuple(row_ranges)),
        out_shape=jax.ShapeDtypeStruct((num_nodes, HP), _BF16),
        in_specs=[_VMEM() for _ in inputs],
        out_specs=_VMEM(),
        compiler_params=_CPARAMS,
    )(*inputs)


# --------------------------- kernel 2: full SGModule --------------------------

def _make_trans_kernel(num_layers, hidden):
    eps = 1e-6

    def kernel(x_ref, fc_w_ref, fc_b_ref, ln_g_ref, ln_b_ref, qkv_w_ref, o_ref):
        n = x_ref.shape[0]
        mask = _lane_mask(HP, hidden)                # hoisted: built once

        h = jnp.dot(x_ref[...], fc_w_ref[...],
                    preferred_element_type=_F32) + fc_b_ref[...]
        h = _layernorm_relu(h, ln_g_ref[0], ln_b_ref[0], mask, hidden)

        for i in range(num_layers):
            prev = h
            # fused q|k|v projection: one (N, 3*HP) matmul, no bias (qkv_bias=False)
            qkv = jnp.dot(h.astype(_BF16), qkv_w_ref[i],
                          preferred_element_type=_F32)
            q = qkv[:, 0 * HP:1 * HP]
            k = qkv[:, 1 * HP:2 * HP]
            v = qkv[:, 2 * HP:3 * HP]

            # qs[qs==0]=eps / ks[ks==0]=eps, restricted to real lanes so padded
            # lanes stay exactly zero.
            q = jnp.where(jnp.logical_and(q == 0.0, mask), eps, q)
            k = jnp.where(jnp.logical_and(k == 0.0, mask), eps, k)
            # L2-normalize along the feature axis (EUP rsqrt).
            q = q * lax.rsqrt(jnp.sum(q * q, axis=-1, keepdims=True))
            k = k * lax.rsqrt(jnp.sum(k * k, axis=-1, keepdims=True))

            # kvs[m,d] = sum_l k[l,m] * v[l,d]
            kvs = lax.dot_general(k.astype(_BF16), v.astype(_BF16),
                                  (((0,), (0,)), ((), ())),
                                  preferred_element_type=_F32)
            attn_num = jnp.dot(q.astype(_BF16), kvs.astype(_BF16),
                               preferred_element_type=_F32) + float(n) * v

            ks_sum = jnp.sum(k, axis=0, keepdims=True)          # (1, HP)
            # VPU reduction instead of a narrow f32 MXU dot.
            normalizer = jnp.sum(q * ks_sum, axis=-1, keepdims=True) + float(n)
            attn = attn_num / normalizer                        # exact divide

            h = (attn + prev) * 0.5
            h = _layernorm_relu(h, ln_g_ref[i + 1], ln_b_ref[i + 1], mask, hidden)

        o_ref[...] = h.astype(o_ref.dtype)

    return kernel


def trans_conv(x, tp, hidden):
    num_layers = tp["qkv_w"].shape[0]
    n = x.shape[0]
    return pl.pallas_call(
        _make_trans_kernel(num_layers, hidden),
        out_shape=jax.ShapeDtypeStruct((n, HP), _BF16),
        in_specs=[_VMEM()] * 6,
        out_specs=_VMEM(),
        compiler_params=_CPARAMS,
    )(x, tp["fc_w"], tp["fc_b"], tp["ln_g"], tp["ln_b"], tp["qkv_w"])


# --------------- kernel 3: GraphModule + residual combine + output FC --------

def _make_graph_combine_kernel(num_layers, graph_weight):
    gw = float(graph_weight)

    def kernel(x_ref, a_ref, x1_ref, fc_w_ref, fc_b_ref, bn_s_ref, bn_b_ref,
               conv_w_ref, conv_b_ref, ow_ref, ob_ref, o_ref):
        a = a_ref[...]                                           # (N, N) bf16
        h = jnp.dot(x_ref[...], fc_w_ref[...],
                    preferred_element_type=_F32) + fc_b_ref[...]
        h = jnp.maximum(h * bn_s_ref[0] + bn_b_ref[0], 0.0)      # BN(eval)+ReLU
        last = h                                                 # NOT updated (matches ref)
        for i in range(num_layers):
            xw = jnp.dot(h.astype(_BF16), conv_w_ref[i],
                         preferred_element_type=_F32)
            agg = jnp.dot(a, xw.astype(_BF16),
                          preferred_element_type=_F32) + conv_b_ref[i]
            h = jnp.maximum(agg * bn_s_ref[i + 1] + bn_b_ref[i + 1], 0.0)
            h = h + last
        # fused: x = gw * x2 + (1-gw) * x1 ; out = x @ Wo + bo
        x1 = x1_ref[...].astype(_F32)
        xc = gw * h + (1.0 - gw) * x1
        o_ref[...] = jnp.dot(xc.astype(_BF16), ow_ref[...],
                             preferred_element_type=_F32) + ob_ref[...]
    return kernel


def graph_combine_fc(x, a_norm, x1, gp, fc_w, fc_b, graph_weight):
    num_layers = gp["conv_w"].shape[0]
    n = x.shape[0]
    return pl.pallas_call(
        _make_graph_combine_kernel(num_layers, graph_weight),
        out_shape=jax.ShapeDtypeStruct((n, HP), _F32),
        in_specs=[_VMEM()] * 11,
        out_specs=_VMEM(),
        compiler_params=_CPARAMS,
    )(x, a_norm, x1, gp["fc_w"], gp["fc_b"], gp["bn_s"], gp["bn_b"],
      gp["conv_w"], gp["conv_b"], fc_w, fc_b)


# --------------------------- model glue ---------------------------------------

def gcn_norm_dense(edge_index, num_nodes):
    """Dense D^{-1/2}(A+I)D^{-1/2}; A[i,j] = #edges j->i. Built once per graph."""
    src, dst = edge_index[0], edge_index[1]
    a = jnp.zeros((num_nodes, num_nodes), jnp.float32).at[dst, src].add(1.0)
    a = a + jnp.eye(num_nodes, dtype=jnp.float32)
    deg = jnp.sum(a, axis=1)
    dinv = jnp.where(deg > 0, 1.0 / jnp.sqrt(deg), 0.0)
    return (a * dinv[:, None] * dinv[None, :]).astype(_BF16)


def sgformer_forward(packed, x_list, a_norm, *, hidden, out_dim,
                     graph_weight=0.5):
    node_counts = [x.shape[0] for x in x_list]
    num_nodes = sum(node_counts)
    row_ranges, off = [], 0
    for n in node_counts:
        row_ranges.append((off, n))
        off += n

    x = embed_nodes(x_list, packed["in_w"], packed["in_b"], row_ranges, num_nodes)
    x1 = trans_conv(x, packed["trans"], hidden)
    out = graph_combine_fc(x, a_norm, x1, packed["graph"],
                           packed["fc_w"], packed["fc_b"], graph_weight)
    out = out[:, :out_dim]
    return tuple(out[s:s + n, :] for (s, n) in row_ranges)


# --------------------------- parameters ---------------------------------------

def _linear_w(key, fan_in, fan_out):
    bound = (6.0 / fan_in) ** 0.5            # kaiming-uniform style bound
    return jax.random.uniform(key, (fan_in, fan_out), jnp.float32, -bound, bound)


def init_raw_params(key, in_dims, node_type_list, hidden, out_dim,
                    trans_layers=2, gnn_layers=3):
    keys = iter(jax.random.split(key, 64))
    zeros = lambda n: jnp.zeros((n,), jnp.float32)
    ones = lambda n: jnp.ones((n,), jnp.float32)
    return {
        "in_linear": {nt: {"w": _linear_w(next(keys), in_dims[nt], hidden),
                           "b": zeros(hidden)} for nt in node_type_list},
        "trans": {
            "fc": {"w": _linear_w(next(keys), hidden, hidden), "b": zeros(hidden)},
            "ln": [{"g": ones(hidden), "b": zeros(hidden)}
                   for _ in range(trans_layers + 1)],
            "attn": [{"q_w": _linear_w(next(keys), hidden, hidden),
                      "k_w": _linear_w(next(keys), hidden, hidden),
                      "v_w": _linear_w(next(keys), hidden, hidden)}
                     for _ in range(trans_layers)],
        },
        "graph": {
            "fc": {"w": _linear_w(next(keys), hidden, hidden), "b": zeros(hidden)},
            "bn": [{"g": ones(hidden), "b": zeros(hidden)}
                   for _ in range(gnn_layers + 1)],
            "conv": [{"w": _linear_w(next(keys), hidden, hidden), "b": zeros(hidden)}
                     for _ in range(gnn_layers)],
        },
        "fc": {"w": _linear_w(next(keys), hidden, out_dim), "b": zeros(out_dim)},
    }


def pack_params(raw, node_type_list):
    """Pad to lane-dense 128, stack per-layer weights, fuse q|k|v, cast weights bf16."""
    bn_eps = 1e-5
    t, g = raw["trans"], raw["graph"]
    return {
        # input Linears padded to (HP, HP): zero rows past in_dim, zero cols past hidden
        "in_w": tuple(_pad2(raw["in_linear"][nt]["w"], HP, HP).astype(_BF16)
                      for nt in node_type_list),
        "in_b": tuple(_pad_row(raw["in_linear"][nt]["b"], HP)
                      for nt in node_type_list),
        "trans": {
            "fc_w": _pad2(t["fc"]["w"], HP, HP).astype(_BF16),
            "fc_b": _pad_row(t["fc"]["b"], HP),
            "ln_g": jnp.stack([_pad_row(l["g"], HP) for l in t["ln"]]),
            "ln_b": jnp.stack([_pad_row(l["b"], HP) for l in t["ln"]]),
            "qkv_w": jnp.stack([
                jnp.concatenate([_pad2(a["q_w"], HP, HP),
                                 _pad2(a["k_w"], HP, HP),
                                 _pad2(a["v_w"], HP, HP)], axis=1)
                for a in t["attn"]]).astype(_BF16),
        },
        "graph": {
            "fc_w": _pad2(g["fc"]["w"], HP, HP).astype(_BF16),
            "fc_b": _pad_row(g["fc"]["b"], HP),
            # BatchNorm1d eval with default running stats (mean=0, var=1)
            "bn_s": jnp.stack([_pad_row(b["g"] / jnp.sqrt(1.0 + bn_eps), HP)
                               for b in g["bn"]]),
            "bn_b": jnp.stack([_pad_row(b["b"], HP) for b in g["bn"]]),
            "conv_w": jnp.stack([_pad2(c["w"], HP, HP)
                                 for c in g["conv"]]).astype(_BF16),
            "conv_b": jnp.stack([_pad_row(c["b"], HP) for c in g["conv"]]),
        },
        "fc_w": _pad2(raw["fc"]["w"], HP, HP).astype(_BF16),
        "fc_b": _pad_row(raw["fc"]["b"], HP),
    }


# --------------------------- demo ---------------------------------------------

if __name__ == "__main__":
    key = jax.random.PRNGKey(0)
    k_param, k_xa, k_xb, k_e = jax.random.split(key, 4)

    node_type_list = ["a", "b"]
    in_dims = {"a": 12, "b": 20}
    n_nodes = {"a": 8, "b": 8}          # multiples of 8 -> aligned row stores
    hidden, out_dim = 32, 16

    raw = init_raw_params(k_param, in_dims, node_type_list, hidden, out_dim,
                          trans_layers=2, gnn_layers=3)
    packed = pack_params(raw, node_type_list)

    x_dict = {
        "a": jax.random.normal(k_xa, (n_nodes["a"], in_dims["a"]), jnp.float32),
        "b": jax.random.normal(k_xb, (n_nodes["b"], in_dims["b"]), jnp.float32),
    }
    # Pad the feature dim to 128 lanes on the host (zero columns; matching
    # zero rows already padded into in_w) so the LHS loads are full-width.
    x_list = tuple(_pad2(x_dict[nt], x_dict[nt].shape[0], HP)
                   for nt in node_type_list)

    ek = jax.random.split(k_e, 4)
    edge_index_dict = {
        ("a", "to", "b"): jnp.stack([
            jax.random.randint(ek[0], (10,), 0, n_nodes["a"]),
            jax.random.randint(ek[1], (10,), 0, n_nodes["b"]),
        ]).astype(jnp.int32),
        ("b", "to", "a"): jnp.stack([
            jax.random.randint(ek[2], (10,), 0, n_nodes["b"]),
            jax.random.randint(ek[3], (10,), 0, n_nodes["a"]),
        ]).astype(jnp.int32),
    }

    # Homogeneous edge index + cached dense normalized adjacency (hoisted out
    # of the forward: depends only on graph structure).
    offset_dict, offset = {}, 0
    for nt in node_type_list:
        offset_dict[nt] = offset
        offset += n_nodes[nt]
    edges = []
    for et, e in edge_index_dict.items():
        edges.append(jnp.stack([e[0] + offset_dict[et[0]],
                                e[1] + offset_dict[et[-1]]]))
    edge_index = jnp.concatenate(edges, axis=1)
    a_norm = gcn_norm_dense(edge_index, offset)

    fwd = jax.jit(functools.partial(sgformer_forward, hidden=hidden,
                                    out_dim=out_dim, graph_weight=0.5))
    z_list = fwd(packed, x_list, a_norm)
    z_dict = {nt: z for nt, z in zip(node_type_list, z_list)}
    for nt, z in z_dict.items():
        jax.block_until_ready(z)
        assert z.shape == (n_nodes[nt], out_dim), (nt, z.shape)

    # TODO(synk): training-mode dropout / BatchNorm running-stat updates are
    # intentionally not modeled (eval-mode forward only).
    print("KERNEL_OK")
</pallas_src>

<mosaic_0001>
module attributes {stable_mosaic.version = 11 : i64} {
  func.func @kernel(%arg0: memref<8x128xf32, #tpu.memory_space<vmem>>, %arg1: memref<128x128xbf16, #tpu.memory_space<vmem>>, %arg2: memref<1x128xf32, #tpu.memory_space<vmem>>, %arg3: memref<8x128xf32, #tpu.memory_space<vmem>>, %arg4: memref<128x128xbf16, #tpu.memory_space<vmem>>, %arg5: memref<1x128xf32, #tpu.memory_space<vmem>>, %arg6: memref<16x128xbf16, #tpu.memory_space<vmem>>) attributes {dimension_semantics = [], scalar_prefetch = 0 : i64, scratch_operands = 0 : i64, tpu.core_type = #tpu.core_type<tc>} {
    %c0 = arith.constant 0 : index
    %c0_0 = arith.constant 0 : index
    %0 = vector.load %arg0[%c0, %c0_0] : memref<8x128xf32, #tpu.memory_space<vmem>>, vector<8x128xf32>
    %1 = arith.truncf %0 : vector<8x128xf32> to vector<8x128xbf16>
    %c0_1 = arith.constant 0 : index
    %c0_2 = arith.constant 0 : index
    %2 = vector.load %arg1[%c0_1, %c0_2] : memref<128x128xbf16, #tpu.memory_space<vmem>>, vector<128x128xbf16>
    %c0_3 = arith.constant 0 : index
    %c0_4 = arith.constant 0 : index
    %3 = vector.load %arg2[%c0_3, %c0_4] : memref<1x128xf32, #tpu.memory_space<vmem>>, vector<1x128xf32>
    %cst = arith.constant dense<0.000000e+00> : vector<8x128xf32>
    %4 = tpu.matmul %1, %2, %cst {dimension_numbers = #tpu.dot_dimension_numbers<[1], [0], [0], [1], [0, 0, 1, 1], [], []>} : vector<8x128xbf16>, vector<128x128xbf16>, vector<8x128xf32> -> vector<8x128xf32>
    %5 = vector.broadcast %3 : vector<1x128xf32> to vector<8x128xf32>
    %6 = arith.addf %4, %5 : vector<8x128xf32>
    %7 = arith.truncf %6 : vector<8x128xf32> to vector<8x128xbf16>
    %c0_5 = arith.constant 0 : index
    %c0_6 = arith.constant 0 : index
    %8 = vector.load %arg6[%c0_5, %c0_6] : memref<16x128xbf16, #tpu.memory_space<vmem>>, vector<8x128xbf16>
    tpu.vector_store %arg6[%c0_5, %c0_6], %7 {strides = array<i32>} : memref<16x128xbf16, #tpu.memory_space<vmem>>, vector<8x128xbf16>,
    %c0_7 = arith.constant 0 : index
    %c0_8 = arith.constant 0 : index
    %9 = vector.load %arg3[%c0_7, %c0_8] : memref<8x128xf32, #tpu.memory_space<vmem>>, vector<8x128xf32>
    %10 = arith.truncf %9 : vector<8x128xf32> to vector<8x128xbf16>
    %c0_9 = arith.constant 0 : index
    %c0_10 = arith.constant 0 : index
    %11 = vector.load %arg4[%c0_9, %c0_10] : memref<128x128xbf16, #tpu.memory_space<vmem>>, vector<128x128xbf16>
    %c0_11 = arith.constant 0 : index
    %c0_12 = arith.constant 0 : index
    %12 = vector.load %arg5[%c0_11, %c0_12] : memref<1x128xf32, #tpu.memory_space<vmem>>, vector<1x128xf32>
    %cst_13 = arith.constant dense<0.000000e+00> : vector<8x128xf32>
    %13 = tpu.matmul %10, %11, %cst_13 {dimension_numbers = #tpu.dot_dimension_numbers<[1], [0], [0], [1], [0, 0, 1, 1], [], []>} : vector<8x128xbf16>, vector<128x128xbf16>, vector<8x128xf32> -> vector<8x128xf32>
    %14 = vector.broadcast %12 : vector<1x128xf32> to vector<8x128xf32>
    %15 = arith.addf %13, %14 : vector<8x128xf32>
    %16 = arith.truncf %15 : vector<8x128xf32> to vector<8x128xbf16>
    %c8 = arith.constant 8 : index
    %c0_14 = arith.constant 0 : index
    %17 = vector.load %arg6[%c8, %c0_14] : memref<16x128xbf16, #tpu.memory_space<vmem>>, vector<8x128xbf16>
    tpu.vector_store %arg6[%c8, %c0_14], %16 {strides = array<i32>} : memref<16x128xbf16, #tpu.memory_space<vmem>>, vector<8x128xbf16>,
    return
  }
}

module attributes {stable_mosaic.version = 11 : i64} {
  func.func @kernel(%arg0: memref<16x128xbf16, #tpu.memory_space<vmem>>, %arg1: memref<16x16xbf16, #tpu.memory_space<vmem>>, %arg2: memref<16x128xbf16, #tpu.memory_space<vmem>>, %arg3: memref<128x128xbf16, #tpu.memory_space<vmem>>, %arg4: memref<1x128xf32, #tpu.memory_space<vmem>>, %arg5: memref<4x1x128xf32, #tpu.memory_space<vmem>>, %arg6: memref<4x1x128xf32, #tpu.memory_space<vmem>>, %arg7: memref<3x128x128xbf16, #tpu.memory_space<vmem>>, %arg8: memref<3x1x128xf32, #tpu.memory_space<vmem>>, %arg9: memref<128x128xbf16, #tpu.memory_space<vmem>>, %arg10: memref<1x128xf32, #tpu.memory_space<vmem>>, %arg11: memref<16x128xf32, #tpu.memory_space<vmem>>) attributes {dimension_semantics = [], scalar_prefetch = 0 : i64, scratch_operands = 0 : i64, tpu.core_type = #tpu.core_type<tc>} {
    %c0 = arith.constant 0 : index
    %c0_0 = arith.constant 0 : index
    %0 = vector.load %arg1[%c0, %c0_0] : memref<16x16xbf16, #tpu.memory_space<vmem>>, vector<16x16xbf16>
    %c0_1 = arith.constant 0 : index
    %c0_2 = arith.constant 0 : index
    %1 = vector.load %arg0[%c0_1, %c0_2] : memref<16x128xbf16, #tpu.memory_space<vmem>>, vector<16x128xbf16>
    %c0_3 = arith.constant 0 : index
    %c0_4 = arith.constant 0 : index
    %2 = vector.load %arg3[%c0_3, %c0_4] : memref<128x128xbf16, #tpu.memory_space<vmem>>, vector<128x128xbf16>
    %cst = arith.constant dense<0.000000e+00> : vector<16x128xf32>
    %3 = tpu.matmul %1, %2, %cst {dimension_numbers = #tpu.dot_dimension_numbers<[1], [0], [0], [1], [0, 0, 1, 1], [], []>} : vector<16x128xbf16>, vector<128x128xbf16>, vector<16x128xf32> -> vector<16x128xf32>
    %c0_5 = arith.constant 0 : index
    %c0_6 = arith.constant 0 : index
    %4 = vector.load %arg4[%c0_5, %c0_6] : memref<1x128xf32, #tpu.memory_space<vmem>>, vector<1x128xf32>
    %5 = vector.broadcast %4 : vector<1x128xf32> to vector<16x128xf32>
    %6 = arith.addf %3, %5 : vector<16x128xf32>
    %c0_7 = arith.constant 0 : index
    %c0_8 = arith.constant 0 : index
    %c0_9 = arith.constant 0 : index
    %7 = vector.load %arg5[%c0_7, %c0_8, %c0_9] : memref<4x1x128xf32, #tpu.memory_space<vmem>>, vector<1x1x128xf32>
    %8 = vector.shape_cast %7 : vector<1x1x128xf32> to vector<1x128xf32>
    %9 = vector.broadcast %8 : vector<1x128xf32> to vector<16x128xf32>
    %10 = arith.mulf %6, %9 : vector<16x128xf32>
    %c0_10 = arith.constant 0 : index
    %c0_11 = arith.constant 0 : index
    %c0_12 = arith.constant 0 : index
    %11 = vector.load %arg6[%c0_10, %c0_11, %c0_12] : memref<4x1x128xf32, #tpu.memory_space<vmem>>, vector<1x1x128xf32>
    %12 = vector.shape_cast %11 : vector<1x1x128xf32> to vector<1x128xf32>
    %13 = vector.broadcast %12 : vector<1x128xf32> to vector<16x128xf32>
    %14 = arith.addf %10, %13 : vector<16x128xf32>
    %cst_13 = arith.constant 0.000000e+00 : f32
    %15 = vector.broadcast %cst_13 : f32 to vector<16x128xf32>
    %16 = arith.maximumf %14, %15 : vector<16x128xf32>
    %17 = arith.truncf %16 : vector<16x128xf32> to vector<16x128xbf16>
    %c0_14 = arith.constant 0 : index
    %c0_15 = arith.constant 0 : index
    %c0_16 = arith.constant 0 : index
    %18 = vector.load %arg7[%c0_14, %c0_15, %c0_16] : memref<3x128x128xbf16, #tpu.memory_space<vmem>>, vector<1x128x128xbf16>
    %19 = vector.shape_cast %18 : vector<1x128x128xbf16> to vector<128x128xbf16>
    %cst_17 = arith.constant dense<0.000000e+00> : vector<16x128xf32>
    %20 = tpu.matmul %17, %19, %cst_17 {dimension_numbers = #tpu.dot_dimension_numbers<[1], [0], [0], [1], [0, 0, 1, 1], [], []>} : vector<16x128xbf16>, vector<128x128xbf16>, vector<16x128xf32> -> vector<16x128xf32>
    %21 = arith.truncf %20 : vector<16x128xf32> to vector<16x128xbf16>
    %cst_18 = arith.constant dense<0.000000e+00> : vector<16x128xf32>
    %22 = tpu.matmul %0, %21, %cst_18 {dimension_numbers = #tpu.dot_dimension_numbers<[1], [0], [0], [1], [0, 0, 1, 1], [], []>} : vector<16x16xbf16>, vector<16x128xbf16>, vector<16x128xf32> -> vector<16x128xf32>
    %c0_19 = arith.constant 0 : index
    %c0_20 = arith.constant 0 : index
    %c0_21 = arith.constant 0 : index
    %23 = vector.load %arg8[%c0_19, %c0_20, %c0_21] : memref<3x1x128xf32, #tpu.memory_space<vmem>>, vector<1x1x128xf32>
    %24 = vector.shape_cast %23 : vector<1x1x128xf32> to vector<1x128xf32>
    %25 = vector.broadcast %24 : vector<1x128xf32> to vector<16x128xf32>
    %26 = arith.addf %22, %25 : vector<16x128xf32>
    %c1 = arith.constant 1 : index
    %c0_22 = arith.constant 0 : index
    %c0_23 = arith.constant 0 : index
    %27 = vector.load %arg5[%c1, %c0_22, %c0_23] : memref<4x1x128xf32, #tpu.memory_space<vmem>>, vector<1x1x128xf32>
    %28 = vector.shape_cast %27 : vector<1x1x128xf32> to vector<1x128xf32>
    %29 = vector.broadcast %28 : vector<1x128xf32> to vector<16x128xf32>
    %30 = arith.mulf %26, %29 : vector<16x128xf32>
    %c1_24 = arith.constant 1 : index
    %c0_25 = arith.constant 0 : index
    %c0_26 = arith.constant 0 : index
    %31 = vector.load %arg6[%c1_24, %c0_25, %c0_26] : memref<4x1x128xf32, #tpu.memory_space<vmem>>, vector<1x1x128xf32>
    %32 = vector.shape_cast %31 : vector<1x1x128xf32> to vector<1x128xf32>
    %33 = vector.broadcast %32 : vector<1x128xf32> to vector<16x128xf32>
    %34 = arith.addf %30, %33 : vector<16x128xf32>
    %cst_27 = arith.constant 0.000000e+00 : f32
    %35 = vector.broadcast %cst_27 : f32 to vector<16x128xf32>
    %36 = arith.maximumf %34, %35 : vector<16x128xf32>
    %37 = arith.addf %36, %16 : vector<16x128xf32>
    %38 = arith.truncf %37 : vector<16x128xf32> to vector<16x128xbf16>
    %c1_28 = arith.constant 1 : index
    %c0_29 = arith.constant 0 : index
    %c0_30 = arith.constant 0 : index
    %39 = vector.load %arg7[%c1_28, %c0_29, %c0_30] : memref<3x128x128xbf16, #tpu.memory_space<vmem>>, vector<1x128x128xbf16>
    %40 = vector.shape_cast %39 : vector<1x128x128xbf16> to vector<128x128xbf16>
    %cst_31 = arith.constant dense<0.000000e+00> : vector<16x128xf32>
    %41 = tpu.matmul %38, %40, %cst_31 {dimension_numbers = #tpu.dot_dimension_numbers<[1], [0], [0], [1], [0, 0, 1, 1], [], []>} : vector<16x128xbf16>, vector<128x128xbf16>, vector<16x128xf32> -> vector<16x128xf32>
    %42 = arith.truncf %41 : vector<16x128xf32> to vector<16x128xbf16>
    %cst_32 = arith.constant dense<0.000000e+00> : vector<16x128xf32>
    %43 = tpu.matmul %0, %42, %cst_32 {dimension_numbers = #tpu.dot_dimension_numbers<[1], [0], [0], [1], [0, 0, 1, 1], [], []>} : vector<16x16xbf16>, vector<16x128xbf16>, vector<16x128xf32> -> vector<16x128xf32>
    %c1_33 = arith.constant 1 : index
    %c0_34 = arith.constant 0 : index
    %c0_35 = arith.constant 0 : index
    %44 = vector.load %arg8[%c1_33, %c0_34, %c0_35] : memref<3x1x128xf32, #tpu.memory_space<vmem>>, vector<1x1x128xf32>
    %45 = vector.shape_cast %44 : vector<1x1x128xf32> to vector<1x128xf32>
    %46 = vector.broadcast %45 : vector<1x128xf32> to vector<16x128xf32>
    %47 = arith.addf %43, %46 : vector<16x128xf32>
    %c2 = arith.constant 2 : index
    %c0_36 = arith.constant 0 : index
    %c0_37 = arith.constant 0 : index
    %48 = vector.load %arg5[%c2, %c0_36, %c0_37] : memref<4x1x128xf32, #tpu.memory_space<vmem>>, vector<1x1x128xf32>
    %49 = vector.shape_cast %48 : vector<1x1x128xf32> to vector<1x128xf32>
    %50 = vector.broadcast %49 : vector<1x128xf32> to vector<16x128xf32>
    %51 = arith.mulf %47, %50 : vector<16x128xf32>
    %c2_38 = arith.constant 2 : index
    %c0_39 = arith.constant 0 : index
    %c0_40 = arith.constant 0 : index
    %52 = vector.load %arg6[%c2_38, %c0_39, %c0_40] : memref<4x1x128xf32, #tpu.memory_space<vmem>>, vector<1x1x128xf32>
    %53 = vector.shape_cast %52 : vector<1x1x128xf32> to vector<1x128xf32>
    %54 = vector.broadcast %53 : vector<1x128xf32> to vector<16x128xf32>
    %55 = arith.addf %51, %54 : vector<16x128xf32>
    %cst_41 = arith.constant 0.000000e+00 : f32
    %56 = vector.broadcast %cst_41 : f32 to vector<16x128xf32>
    %57 = arith.maximumf %55, %56 : vector<16x128xf32>
    %58 = arith.addf %57, %16 : vector<16x128xf32>
    %59 = arith.truncf %58 : vector<16x128xf32> to vector<16x128xbf16>
    %c2_42 = arith.constant 2 : index
    %c0_43 = arith.constant 0 : index
    %c0_44 = arith.constant 0 : index
    %60 = vector.load %arg7[%c2_42, %c0_43, %c0_44] : memref<3x128x128xbf16, #tpu.memory_space<vmem>>, vector<1x128x128xbf16>
    %61 = vector.shape_cast %60 : vector<1x128x128xbf16> to vector<128x128xbf16>
    %cst_45 = arith.constant dense<0.000000e+00> : vector<16x128xf32>
    %62 = tpu.matmul %59, %61, %cst_45 {dimension_numbers = #tpu.dot_dimension_numbers<[1], [0], [0], [1], [0, 0, 1, 1], [], []>} : vector<16x128xbf16>, vector<128x128xbf16>, vector<16x128xf32> -> vector<16x128xf32>
    %63 = arith.truncf %62 : vector<16x128xf32> to vector<16x128xbf16>
    %cst_46 = arith.constant dense<0.000000e+00> : vector<16x128xf32>
    %64 = tpu.matmul %0, %63, %cst_46 {dimension_numbers = #tpu.dot_dimension_numbers<[1], [0], [0], [1], [0, 0, 1, 1], [], []>} : vector<16x16xbf16>, vector<16x128xbf16>, vector<16x128xf32> -> vector<16x128xf32>
    %c2_47 = arith.constant 2 : index
    %c0_48 = arith.constant 0 : index
    %c0_49 = arith.constant 0 : index
    %65 = vector.load %arg8[%c2_47, %c0_48, %c0_49] : memref<3x1x128xf32, #tpu.memory_space<vmem>>, vector<1x1x128xf32>
    %66 = vector.shape_cast %65 : vector<1x1x128xf32> to vector<1x128xf32>
    %67 = vector.broadcast %66 : vector<1x128xf32> to vector<16x128xf32>
    %68 = arith.addf %64, %67 : vector<16x128xf32>
    %c3 = arith.constant 3 : index
    %c0_50 = arith.constant 0 : index
    %c0_51 = arith.constant 0 : index
    %69 = vector.load %arg5[%c3, %c0_50, %c0_51] : memref<4x1x128xf32, #tpu.memory_space<vmem>>, vector<1x1x128xf32>
    %70 = vector.shape_cast %69 : vector<1x1x128xf32> to vector<1x128xf32>
    %71 = vector.broadcast %70 : vector<1x128xf32> to vector<16x128xf32>
    %72 = arith.mulf %68, %71 : vector<16x128xf32>
    %c3_52 = arith.constant 3 : index
    %c0_53 = arith.constant 0 : index
    %c0_54 = arith.constant 0 : index
    %73 = vector.load %arg6[%c3_52, %c0_53, %c0_54] : memref<4x1x128xf32, #tpu.memory_space<vmem>>, vector<1x1x128xf32>
    %74 = vector.shape_cast %73 : vector<1x1x128xf32> to vector<1x128xf32>
    %75 = vector.broadcast %74 : vector<1x128xf32> to vector<16x128xf32>
    %76 = arith.addf %72, %75 : vector<16x128xf32>
    %cst_55 = arith.constant 0.000000e+00 : f32
    %77 = vector.broadcast %cst_55 : f32 to vector<16x128xf32>
    %78 = arith.maximumf %76, %77 : vector<16x128xf32>
    %79 = arith.addf %78, %16 : vector<16x128xf32>
    %c0_56 = arith.constant 0 : index
    %c0_57 = arith.constant 0 : index
    %80 = vector.load %arg2[%c0_56, %c0_57] : memref<16x128xbf16, #tpu.memory_space<vmem>>, vector<16x128xbf16>
    %81 = arith.extf %80 : vector<16x128xbf16> to vector<16x128xf32>
    %cst_58 = arith.constant 5.000000e-01 : f32
    %82 = vector.broadcast %cst_58 : f32 to vector<16x128xf32>
    %83 = arith.mulf %82, %79 : vector<16x128xf32>
    %cst_59 = arith.constant 5.000000e-01 : f32
    %84 = vector.broadcast %cst_59 : f32 to vector<16x128xf32>
    %85 = arith.mulf %84, %81 : vector<16x128xf32>
    %86 = arith.addf %83, %85 : vector<16x128xf32>
    %87 = arith.truncf %86 : vector<16x128xf32> to vector<16x128xbf16>
    %c0_60 = arith.constant 0 : index
    %c0_61 = arith.constant 0 : index
    %88 = vector.load %arg9[%c0_60, %c0_61] : memref<128x128xbf16, #tpu.memory_space<vmem>>, vector<128x128xbf16>
    %cst_62 = arith.constant dense<0.000000e+00> : vector<16x128xf32>
    %89 = tpu.matmul %87, %88, %cst_62 {dimension_numbers = #tpu.dot_dimension_numbers<[1], [0], [0], [1], [0, 0, 1, 1], [], []>} : vector<16x128xbf16>, vector<128x128xbf16>, vector<16x128xf32> -> vector<16x128xf32>
    %c0_63 = arith.constant 0 : index
    %c0_64 = arith.constant 0 : index
    %90 = vector.load %arg10[%c0_63, %c0_64] : memref<1x128xf32, #tpu.memory_space<vmem>>, vector<1x128xf32>
    %91 = vector.broadcast %90 : vector<1x128xf32> to vector<16x128xf32>
    %92 = arith.addf %89, %91 : vector<16x128xf32>
    %c0_65 = arith.constant 0 : index
    %c0_66 = arith.constant 0 : index
    %93 = vector.load %arg11[%c0_65, %c0_66] : memref<16x128xf32, #tpu.memory_space<vmem>>, vector<16x128xf32>
    tpu.vector_store %arg11[%c0_65, %c0_66], %92 {strides = array<i32>} : memref<16x128xf32, #tpu.memory_space<vmem>>, vector<16x128xf32>,
    return
  }
}

module attributes {stable_mosaic.version = 11 : i64} {
  func.func @kernel(%arg0: memref<16x128xbf16, #tpu.memory_space<vmem>>, %arg1: memref<128x128xbf16, #tpu.memory_space<vmem>>, %arg2: memref<1x128xf32, #tpu.memory_space<vmem>>, %arg3: memref<3x1x128xf32, #tpu.memory_space<vmem>>, %arg4: memref<3x1x128xf32, #tpu.memory_space<vmem>>, %arg5: memref<2x128x384xbf16, #tpu.memory_space<vmem>>, %arg6: memref<16x128xbf16, #tpu.memory_space<vmem>>) attributes {dimension_semantics = [], scalar_prefetch = 0 : i64, scratch_operands = 0 : i64, tpu.core_type = #tpu.core_type<tc>} {
    %0 = tpu.iota {dimensions = array<i32: 1>} : vector<1x128xi32>
    %c32_i32 = arith.constant 32 : i32
    %1 = vector.broadcast %c32_i32 : i32 to vector<1x128xi32>
    %2 = arith.cmpi slt, %0, %1 : vector<1x128xi32>
    %c0 = arith.constant 0 : index
    %c0_0 = arith.constant 0 : index
    %3 = vector.load %arg0[%c0, %c0_0] : memref<16x128xbf16, #tpu.memory_space<vmem>>, vector<16x128xbf16>
    %c0_1 = arith.constant 0 : index
    %c0_2 = arith.constant 0 : index
    %4 = vector.load %arg1[%c0_1, %c0_2] : memref<128x128xbf16, #tpu.memory_space<vmem>>, vector<128x128xbf16>
    %cst = arith.constant dense<0.000000e+00> : vector<16x128xf32>
    %5 = tpu.matmul %3, %4, %cst {dimension_numbers = #tpu.dot_dimension_numbers<[1], [0], [0], [1], [0, 0, 1, 1], [], []>} : vector<16x128xbf16>, vector<128x128xbf16>, vector<16x128xf32> -> vector<16x128xf32>
    %c0_3 = arith.constant 0 : index
    %c0_4 = arith.constant 0 : index
    %6 = vector.load %arg2[%c0_3, %c0_4] : memref<1x128xf32, #tpu.memory_space<vmem>>, vector<1x128xf32>
    %7 = vector.broadcast %6 : vector<1x128xf32> to vector<16x128xf32>
    %8 = arith.addf %5, %7 : vector<16x128xf32>
    %c0_5 = arith.constant 0 : index
    %c0_6 = arith.constant 0 : index
    %c0_7 = arith.constant 0 : index
    %9 = vector.load %arg3[%c0_5, %c0_6, %c0_7] : memref<3x1x128xf32, #tpu.memory_space<vmem>>, vector<1x1x128xf32>
    %10 = vector.shape_cast %9 : vector<1x1x128xf32> to vector<1x128xf32>
    %c0_8 = arith.constant 0 : index
    %c0_9 = arith.constant 0 : index
    %c0_10 = arith.constant 0 : index
    %11 = vector.load %arg4[%c0_8, %c0_9, %c0_10] : memref<3x1x128xf32, #tpu.memory_space<vmem>>, vector<1x1x128xf32>
    %12 = vector.shape_cast %11 : vector<1x1x128xf32> to vector<1x128xf32>
    %cst_11 = arith.constant dense<0.000000e+00> : vector<16xf32>
    %13 = vector.multi_reduction <add>, %8, %cst_11 [1] : vector<16x128xf32> to vector<16xf32>
    %14 = vector.shape_cast %13 : vector<16xf32> to vector<16x1xf32>
    %cst_12 = arith.constant 3.125000e-02 : f32
    %15 = vector.broadcast %cst_12 : f32 to vector<16x1xf32>
    %16 = arith.mulf %14, %15 : vector<16x1xf32>
    %17 = vector.broadcast %16 : vector<16x1xf32> to vector<16x128xf32>
    %18 = arith.subf %8, %17 : vector<16x128xf32>
    %cst_13 = arith.constant 0.000000e+00 : f32
    %19 = vector.shape_cast %2 : vector<1x128xi1> to vector<1x128xi1>
    %20 = vector.broadcast %19 : vector<1x128xi1> to vector<16x128xi1>
    %21 = vector.broadcast %cst_13 : f32 to vector<16x128xf32>
    %22 = arith.select %20, %18, %21 : vector<16x128xi1>, vector<16x128xf32>
    %23 = arith.mulf %22, %22 : vector<16x128xf32>
    %cst_14 = arith.constant dense<0.000000e+00> : vector<16xf32>
    %24 = vector.multi_reduction <add>, %23, %cst_14 [1] : vector<16x128xf32> to vector<16xf32>
    %25 = vector.shape_cast %24 : vector<16xf32> to vector<16x1xf32>
    %cst_15 = arith.constant 3.125000e-02 : f32
    %26 = vector.broadcast %cst_15 : f32 to vector<16x1xf32>
    %27 = arith.mulf %25, %26 : vector<16x1xf32>
    %cst_16 = arith.constant 9.99999974E-6 : f32
    %28 = vector.broadcast %cst_16 : f32 to vector<16x1xf32>
    %29 = arith.addf %27, %28 : vector<16x1xf32>
    %30 = math.rsqrt %29 : vector<16x1xf32>
    %31 = vector.broadcast %30 : vector<16x1xf32> to vector<16x128xf32>
    %32 = arith.mulf %22, %31 : vector<16x128xf32>
    %33 = vector.broadcast %10 : vector<1x128xf32> to vector<16x128xf32>
    %34 = arith.mulf %32, %33 : vector<16x128xf32>
    %35 = vector.broadcast %12 : vector<1x128xf32> to vector<16x128xf32>
    %36 = arith.addf %34, %35 : vector<16x128xf32>
    %cst_17 = arith.constant 0.000000e+00 : f32
    %37 = vector.broadcast %cst_17 : f32 to vector<16x128xf32>
    %38 = arith.maximumf %36, %37 : vector<16x128xf32>
    %39 = arith.truncf %38 : vector<16x128xf32> to vector<16x128xbf16>
    %c0_18 = arith.constant 0 : index
    %c0_19 = arith.constant 0 : index
    %c0_20 = arith.constant 0 : index
    %40 = vector.load %arg5[%c0_18, %c0_19, %c0_20] : memref<2x128x384xbf16, #tpu.memory_space<vmem>>, vector<1x128x384xbf16>
    %41 = vector.shape_cast %40 : vector<1x128x384xbf16> to vector<128x384xbf16>
    %cst_21 = arith.constant dense<0.000000e+00> : vector<16x384xf32>
    %42 = tpu.matmul %39, %41, %cst_21 {dimension_numbers = #tpu.dot_dimension_numbers<[1], [0], [0], [1], [0, 0, 1, 1], [], []>} : vector<16x128xbf16>, vector<128x384xbf16>, vector<16x384xf32> -> vector<16x384xf32>
    %43 = vector.extract_strided_slice %42 {offsets = [0, 0], sizes = [16, 128], strides = [1, 1]} : vector<16x384xf32> to vector<16x128xf32>
    %44 = vector.extract_strided_slice %42 {offsets = [0, 128], sizes = [16, 128], strides = [1, 1]} : vector<16x384xf32> to vector<16x128xf32>
    %45 = vector.extract_strided_slice %42 {offsets = [0, 256], sizes = [16, 128], strides = [1, 1]} : vector<16x384xf32> to vector<16x128xf32>
    %cst_22 = arith.constant 0.000000e+00 : f32
    %46 = vector.broadcast %cst_22 : f32 to vector<16x128xf32>
    %47 = arith.cmpf oeq, %43, %46 : vector<16x128xf32>
    %48 = vector.broadcast %2 : vector<1x128xi1> to vector<16x128xi1>
    %49 = arith.andi %47, %48 : vector<16x128xi1>
    %cst_23 = arith.constant 9.99999997E-7 : f32
    %50 = vector.broadcast %cst_23 : f32 to vector<16x128xf32>
    %51 = arith.select %49, %50, %43 : vector<16x128xi1>, vector<16x128xf32>
    %cst_24 = arith.constant 0.000000e+00 : f32
    %52 = vector.broadcast %cst_24 : f32 to vector<16x128xf32>
    %53 = arith.cmpf oeq, %44, %52 : vector<16x128xf32>
    %54 = vector.broadcast %2 : vector<1x128xi1> to vector<16x128xi1>
    %55 = arith.andi %53, %54 : vector<16x128xi1>
    %cst_25 = arith.constant 9.99999997E-7 : f32
    %56 = vector.broadcast %cst_25 : f32 to vector<16x128xf32>
    %57 = arith.select %55, %56, %44 : vector<16x128xi1>, vector<16x128xf32>
    %58 = arith.mulf %51, %51 : vector<16x128xf32>
    %cst_26 = arith.constant dense<0.000000e+00> : vector<16xf32>
    %59 = vector.multi_reduction <add>, %58, %cst_26 [1] : vector<16x128xf32> to vector<16xf32>
    %60 = vector.shape_cast %59 : vector<16xf32> to vector<16x1xf32>
    %61 = math.rsqrt %60 : vector<16x1xf32>
    %62 = vector.broadcast %61 : vector<16x1xf32> to vector<16x128xf32>
    %63 = arith.mulf %51, %62 : vector<16x128xf32>
    %64 = arith.mulf %57, %57 : vector<16x128xf32>
    %cst_27 = arith.constant dense<0.000000e+00> : vector<16xf32>
    %65 = vector.multi_reduction <add>, %64, %cst_27 [1] : vector<16x128xf32> to vector<16xf32>
    %66 = vector.shape_cast %65 : vector<16xf32> to vector<16x1xf32>
    %67 = math.rsqrt %66 : vector<16x1xf32>
    %68 = vector.broadcast %67 : vector<16x1xf32> to vector<16x128xf32>
    %69 = arith.mulf %57, %68 : vector<16x128xf32>
    %70 = arith.truncf %69 : vector<16x128xf32> to vector<16x128xbf16>
    %71 = arith.truncf %45 : vector<16x128xf32> to vector<16x128xbf16>
    %cst_28 = arith.constant dense<0.000000e+00> : vector<128x128xf32>
    %72 = tpu.matmul %70, %71, %cst_28 {dimension_numbers = #tpu.dot_dimension_numbers<[0], [0], [1], [1], [0, 1, 1, 1], [], []>} : vector<16x128xbf16>, vector<16x128xbf16>, vector<128x128xf32> -> vector<128x128xf32>
    %73 = arith.truncf %63 : vector<16x128xf32> to vector<16x128xbf16>
    %74 = arith.truncf %72 : vector<128x128xf32> to vector<128x128xbf16>
    %cst_29 = arith.constant dense<0.000000e+00> : vector<16x128xf32>
    %75 = tpu.matmul %73, %74, %cst_29 {dimension_numbers = #tpu.dot_dimension_numbers<[1], [0], [0], [1], [0, 0, 1, 1], [], []>} : vector<16x128xbf16>, vector<128x128xbf16>, vector<16x128xf32> -> vector<16x128xf32>
    %cst_30 = arith.constant 1.600000e+01 : f32
    %76 = vector.broadcast %cst_30 : f32 to vector<16x128xf32>
    %77 = arith.mulf %76, %45 : vector<16x128xf32>
    %78 = arith.addf %75, %77 : vector<16x128xf32>
    %cst_31 = arith.constant dense<0.000000e+00> : vector<128xf32>
    %79 = vector.multi_reduction <add>, %69, %cst_31 [0] : vector<16x128xf32> to vector<128xf32>
    %80 = vector.shape_cast %79 : vector<128xf32> to vector<1x128xf32>
    %81 = vector.broadcast %80 : vector<1x128xf32> to vector<16x128xf32>
    %82 = arith.mulf %63, %81 : vector<16x128xf32>
    %cst_32 = arith.constant dense<0.000000e+00> : vector<16xf32>
    %83 = vector.multi_reduction <add>, %82, %cst_32 [1] : vector<16x128xf32> to vector<16xf32>
    %84 = vector.shape_cast %83 : vector<16xf32> to vector<16x1xf32>
    %cst_33 = arith.constant 1.600000e+01 : f32
    %85 = vector.broadcast %cst_33 : f32 to vector<16x1xf32>
    %86 = arith.addf %84, %85 : vector<16x1xf32>
    %87 = vector.broadcast %86 : vector<16x1xf32> to vector<16x128xf32>
    %88 = arith.divf %78, %87 : vector<16x128xf32>
    %89 = arith.addf %88, %38 : vector<16x128xf32>
    %cst_34 = arith.constant 5.000000e-01 : f32
    %90 = vector.broadcast %cst_34 : f32 to vector<16x128xf32>
    %91 = arith.mulf %89, %90 : vector<16x128xf32>
    %c1 = arith.constant 1 : index
    %c0_35 = arith.constant 0 : index
    %c0_36 = arith.constant 0 : index
    %92 = vector.load %arg3[%c1, %c0_35, %c0_36] : memref<3x1x128xf32, #tpu.memory_space<vmem>>, vector<1x1x128xf32>
    %93 = vector.shape_cast %92 : vector<1x1x128xf32> to vector<1x128xf32>
    %c1_37 = arith.constant 1 : index
    %c0_38 = arith.constant 0 : index
    %c0_39 = arith.constant 0 : index
    %94 = vector.load %arg4[%c1_37, %c0_38, %c0_39] : memref<3x1x128xf32, #tpu.memory_space<vmem>>, vector<1x1x128xf32>
    %95 = vector.shape_cast %94 : vector<1x1x128xf32> to vector<1x128xf32>
    %cst_40 = arith.constant dense<0.000000e+00> : vector<16xf32>
    %96 = vector.multi_reduction <add>, %91, %cst_40 [1] : vector<16x128xf32> to vector<16xf32>
    %97 = vector.shape_cast %96 : vector<16xf32> to vector<16x1xf32>
    %cst_41 = arith.constant 3.125000e-02 : f32
    %98 = vector.broadcast %cst_41 : f32 to vector<16x1xf32>
    %99 = arith.mulf %97, %98 : vector<16x1xf32>
    %100 = vector.broadcast %99 : vector<16x1xf32> to vector<16x128xf32>
    %101 = arith.subf %91, %100 : vector<16x128xf32>
    %cst_42 = arith.constant 0.000000e+00 : f32
    %102 = vector.shape_cast %2 : vector<1x128xi1> to vector<1x128xi1>
    %103 = vector.broadcast %102 : vector<1x128xi1> to vector<16x128xi1>
    %104 = vector.broadcast %cst_42 : f32 to vector<16x128xf32>
    %105 = arith.select %103, %101, %104 : vector<16x128xi1>, vector<16x128xf32>
    %106 = arith.mulf %105, %105 : vector<16x128xf32>
    %cst_43 = arith.constant dense<0.000000e+00> : vector<16xf32>
    %107 = vector.multi_reduction <add>, %106, %cst_43 [1] : vector<16x128xf32> to vector<16xf32>
    %108 = vector.shape_cast %107 : vector<16xf32> to vector<16x1xf32>
    %cst_44 = arith.constant 3.125000e-02 : f32
    %109 = vector.broadcast %cst_44 : f32 to vector<16x1xf32>
    %110 = arith.mulf %108, %109 : vector<16x1xf32>
    %cst_45 = arith.constant 9.99999974E-6 : f32
    %111 = vector.broadcast %cst_45 : f32 to vector<16x1xf32>
    %112 = arith.addf %110, %111 : vector<16x1xf32>
    %113 = math.rsqrt %112 : vector<16x1xf32>
    %114 = vector.broadcast %113 : vector<16x1xf32> to vector<16x128xf32>
    %115 = arith.mulf %105, %114 : vector<16x128xf32>
    %116 = vector.broadcast %93 : vector<1x128xf32> to vector<16x128xf32>
    %117 = arith.mulf %115, %116 : vector<16x128xf32>
    %118 = vector.broadcast %95 : vector<1x128xf32> to vector<16x128xf32>
    %119 = arith.addf %117, %118 : vector<16x128xf32>
    %cst_46 = arith.constant 0.000000e+00 : f32
    %120 = vector.broadcast %cst_46 : f32 to vector<16x128xf32>
    %121 = arith.maximumf %119, %120 : vector<16x128xf32>
    %122 = arith.truncf %121 : vector<16x128xf32> to vector<16x128xbf16>
    %c1_47 = arith.constant 1 : index
    %c0_48 = arith.constant 0 : index
    %c0_49 = arith.constant 0 : index
    %123 = vector.load %arg5[%c1_47, %c0_48, %c0_49] : memref<2x128x384xbf16, #tpu.memory_space<vmem>>, vector<1x128x384xbf16>
    %124 = vector.shape_cast %123 : vector<1x128x384xbf16> to vector<128x384xbf16>
    %cst_50 = arith.constant dense<0.000000e+00> : vector<16x384xf32>
    %125 = tpu.matmul %122, %124, %cst_50 {dimension_numbers = #tpu.dot_dimension_numbers<[1], [0], [0], [1], [0, 0, 1, 1], [], []>} : vector<16x128xbf16>, vector<128x384xbf16>, vector<16x384xf32> -> vector<16x384xf32>
    %126 = vector.extract_strided_slice %125 {offsets = [0, 0], sizes = [16, 128], strides = [1, 1]} : vector<16x384xf32> to vector<16x128xf32>
    %127 = vector.extract_strided_slice %125 {offsets = [0, 128], sizes = [16, 128], strides = [1, 1]} : vector<16x384xf32> to vector<16x128xf32>
    %128 = vector.extract_strided_slice %125 {offsets = [0, 256], sizes = [16, 128], strides = [1, 1]} : vector<16x384xf32> to vector<16x128xf32>
    %cst_51 = arith.constant 0.000000e+00 : f32
    %129 = vector.broadcast %cst_51 : f32 to vector<16x128xf32>
    %130 = arith.cmpf oeq, %126, %129 : vector<16x128xf32>
    %131 = vector.broadcast %2 : vector<1x128xi1> to vector<16x128xi1>
    %132 = arith.andi %130, %131 : vector<16x128xi1>
    %cst_52 = arith.constant 9.99999997E-7 : f32
    %133 = vector.broadcast %cst_52 : f32 to vector<16x128xf32>
    %134 = arith.select %132, %133, %126 : vector<16x128xi1>, vector<16x128xf32>
    %cst_53 = arith.constant 0.000000e+00 : f32
    %135 = vector.broadcast %cst_53 : f32 to vector<16x128xf32>
    %136 = arith.cmpf oeq, %127, %135 : vector<16x128xf32>
    %137 = vector.broadcast %2 : vector<1x128xi1> to vector<16x128xi1>
    %138 = arith.andi %136, %137 : vector<16x128xi1>
    %cst_54 = arith.constant 9.99999997E-7 : f32
    %139 = vector.broadcast %cst_54 : f32 to vector<16x128xf32>
    %140 = arith.select %138, %139, %127 : vector<16x128xi1>, vector<16x128xf32>
    %141 = arith.mulf %134, %134 : vector<16x128xf32>
    %cst_55 = arith.constant dense<0.000000e+00> : vector<16xf32>
    %142 = vector.multi_reduction <add>, %141, %cst_55 [1] : vector<16x128xf32> to vector<16xf32>
    %143 = vector.shape_cast %142 : vector<16xf32> to vector<16x1xf32>
    %144 = math.rsqrt %143 : vector<16x1xf32>
    %145 = vector.broadcast %144 : vector<16x1xf32> to vector<16x128xf32>
    %146 = arith.mulf %134, %145 : vector<16x128xf32>
    %147 = arith.mulf %140, %140 : vector<16x128xf32>
    %cst_56 = arith.constant dense<0.000000e+00> : vector<16xf32>
    %148 = vector.multi_reduction <add>, %147, %cst_56 [1] : vector<16x128xf32> to vector<16xf32>
    %149 = vector.shape_cast %148 : vector<16xf32> to vector<16x1xf32>
    %150 = math.rsqrt %149 : vector<16x1xf32>
    %151 = vector.broadcast %150 : vector<16x1xf32> to vector<16x128xf32>
    %152 = arith.mulf %140, %151 : vector<16x128xf32>
    %153 = arith.truncf %152 : vector<16x128xf32> to vector<16x128xbf16>
    %154 = arith.truncf %128 : vector<16x128xf32> to vector<16x128xbf16>
    %cst_57 = arith.constant dense<0.000000e+00> : vector<128x128xf32>
    %155 = tpu.matmul %153, %154, %cst_57 {dimension_numbers = #tpu.dot_dimension_numbers<[0], [0], [1], [1], [0, 1, 1, 1], [], []>} : vector<16x128xbf16>, vector<16x128xbf16>, vector<128x128xf32> -> vector<128x128xf32>
    %156 = arith.truncf %146 : vector<16x128xf32> to vector<16x128xbf16>
    %157 = arith.truncf %155 : vector<128x128xf32> to vector<128x128xbf16>
    %cst_58 = arith.constant dense<0.000000e+00> : vector<16x128xf32>
    %158 = tpu.matmul %156, %157, %cst_58 {dimension_numbers = #tpu.dot_dimension_numbers<[1], [0], [0], [1], [0, 0, 1, 1], [], []>} : vector<16x128xbf16>, vector<128x128xbf16>, vector<16x128xf32> -> vector<16x128xf32>
    %cst_59 = arith.constant 1.600000e+01 : f32
    %159 = vector.broadcast %cst_59 : f32 to vector<16x128xf32>
    %160 = arith.mulf %159, %128 : vector<16x128xf32>
    %161 = arith.addf %158, %160 : vector<16x128xf32>
    %cst_60 = arith.constant dense<0.000000e+00> : vector<128xf32>
    %162 = vector.multi_reduction <add>, %152, %cst_60 [0] : vector<16x128xf32> to vector<128xf32>
    %163 = vector.shape_cast %162 : vector<128xf32> to vector<1x128xf32>
    %164 = vector.broadcast %163 : vector<1x128xf32> to vector<16x128xf32>
    %165 = arith.mulf %146, %164 : vector<16x128xf32>
    %cst_61 = arith.constant dense<0.000000e+00> : vector<16xf32>
    %166 = vector.multi_reduction <add>, %165, %cst_61 [1] : vector<16x128xf32> to vector<16xf32>
    %167 = vector.shape_cast %166 : vector<16xf32> to vector<16x1xf32>
    %cst_62 = arith.constant 1.600000e+01 : f32
    %168 = vector.broadcast %cst_62 : f32 to vector<16x1xf32>
    %169 = arith.addf %167, %168 : vector<16x1xf32>
    %170 = vector.broadcast %169 : vector<16x1xf32> to vector<16x128xf32>
    %171 = arith.divf %161, %170 : vector<16x128xf32>
    %172 = arith.addf %171, %121 : vector<16x128xf32>
    %cst_63 = arith.constant 5.000000e-01 : f32
    %173 = vector.broadcast %cst_63 : f32 to vector<16x128xf32>
    %174 = arith.mulf %172, %173 : vector<16x128xf32>
    %c2 = arith.constant 2 : index
    %c0_64 = arith.constant 0 : index
    %c0_65 = arith.constant 0 : index
    %175 = vector.load %arg3[%c2, %c0_64, %c0_65] : memref<3x1x128xf32, #tpu.memory_space<vmem>>, vector<1x1x128xf32>
    %176 = vector.shape_cast %175 : vector<1x1x128xf32> to vector<1x128xf32>
    %c2_66 = arith.constant 2 : index
    %c0_67 = arith.constant 0 : index
    %c0_68 = arith.constant 0 : index
    %177 = vector.load %arg4[%c2_66, %c0_67, %c0_68] : memref<3x1x128xf32, #tpu.memory_space<vmem>>, vector<1x1x128xf32>
    %178 = vector.shape_cast %177 : vector<1x1x128xf32> to vector<1x128xf32>
    %cst_69 = arith.constant dense<0.000000e+00> : vector<16xf32>
    %179 = vector.multi_reduction <add>, %174, %cst_69 [1] : vector<16x128xf32> to vector<16xf32>
    %180 = vector.shape_cast %179 : vector<16xf32> to vector<16x1xf32>
    %cst_70 = arith.constant 3.125000e-02 : f32
    %181 = vector.broadcast %cst_70 : f32 to vector<16x1xf32>
    %182 = arith.mulf %180, %181 : vector<16x1xf32>
    %183 = vector.broadcast %182 : vector<16x1xf32> to vector<16x128xf32>
    %184 = arith.subf %174, %183 : vector<16x128xf32>
    %cst_71 = arith.constant 0.000000e+00 : f32
    %185 = vector.shape_cast %2 : vector<1x128xi1> to vector<1x128xi1>
    %186 = vector.broadcast %185 : vector<1x128xi1> to vector<16x128xi1>
    %187 = vector.broadcast %cst_71 : f32 to vector<16x128xf32>
    %188 = arith.select %186, %184, %187 : vector<16x128xi1>, vector<16x128xf32>
    %189 = arith.mulf %188, %188 : vector<16x128xf32>
    %cst_72 = arith.constant dense<0.000000e+00> : vector<16xf32>
    %190 = vector.multi_reduction <add>, %189, %cst_72 [1] : vector<16x128xf32> to vector<16xf32>
    %191 = vector.shape_cast %190 : vector<16xf32> to vector<16x1xf32>
    %cst_73 = arith.constant 3.125000e-02 : f32
    %192 = vector.broadcast %cst_73 : f32 to vector<16x1xf32>
    %193 = arith.mulf %191, %192 : vector<16x1xf32>
    %cst_74 = arith.constant 9.99999974E-6 : f32
    %194 = vector.broadcast %cst_74 : f32 to vector<16x1xf32>
    %195 = arith.addf %193, %194 : vector<16x1xf32>
    %196 = math.rsqrt %195 : vector<16x1xf32>
    %197 = vector.broadcast %196 : vector<16x1xf32> to vector<16x128xf32>
    %198 = arith.mulf %188, %197 : vector<16x128xf32>
    %199 = vector.broadcast %176 : vector<1x128xf32> to vector<16x128xf32>
    %200 = arith.mulf %198, %199 : vector<16x128xf32>
    %201 = vector.broadcast %178 : vector<1x128xf32> to vector<16x128xf32>
    %202 = arith.addf %200, %201 : vector<16x128xf32>
    %cst_75 = arith.constant 0.000000e+00 : f32
    %203 = vector.broadcast %cst_75 : f32 to vector<16x128xf32>
    %204 = arith.maximumf %202, %203 : vector<16x128xf32>
    %205 = arith.truncf %204 : vector<16x128xf32> to vector<16x128xbf16>
    %c0_76 = arith.constant 0 : index
    %c0_77 = arith.constant 0 : index
    %206 = vector.load %arg6[%c0_76, %c0_77] : memref<16x128xbf16, #tpu.memory_space<vmem>>, vector<16x128xbf16>
    tpu.vector_store %arg6[%c0_76, %c0_77], %205 {strides = array<i32>} : memref<16x128xbf16, #tpu.memory_space<vmem>>, vector<16x128xbf16>,
    return
  }
}

</mosaic_0001>

<llo_original>
// kernel: sgformer_forward.3
$region0: #{sgformer_forward.3}
  #allocation0 [shape = 'u32[]', space=smem, size = 0x4, offset = 0x4, fixed_abs, tag = 'smem constant byte address 0x4 - core index']
  #allocation1 [shape = 'u32[144,128]{1,0:T(1,128)}', space=vmem, size = 0x12000, scoped, tag = 'internal scratch']
  %s0 = inlined_call_operand.vmem [shape: f32[8,128], index: 0, kind: input, shape index: {}]
  %s1 = inlined_call_operand.hbm [shape: bf16[128,128], index: 1, kind: input, shape index: {}]
  %s2 = inlined_call_operand.hbm [shape: f32[1,128], index: 2, kind: input, shape index: {}]
  %s3 = inlined_call_operand.vmem [shape: f32[8,128], index: 3, kind: input, shape index: {}]
  %s4 = inlined_call_operand.hbm [shape: bf16[128,128], index: 4, kind: input, shape index: {}]
  %s5 = inlined_call_operand.hbm [shape: f32[1,128], index: 5, kind: input, shape index: {}]
  %s6 = inlined_call_operand.vmem [shape: bf16[16,128], index: 6, kind: output, shape index: {}]
  %s7 = sld [smem:[#allocation0]]
  $region50: #{sgformer_forward.3} parent=0
    _
  %s9 = ssub.s32 1, %s7
  %s10 = scalar_select 0, %s9, %s7
  $region1: #{sgformer_forward.3} parent=0
    #allocation2 [shape = 'u8[32768]{0}', space=vmem, size = 0x8000, scoped, tag = 'input window, operand 1, single buffered']
    #allocation3 [shape = 's32[1]{0}', space=sflag, size = 0x4, scoped, tag = 'scoped memory for sgformer_forward.3']
    #allocation4 [shape = 'u8[512]{0}', space=vmem, size = 0x400, scoped, tag = 'input window, operand 2, single buffered']
    #allocation5 [shape = 's32[1]{0}', space=sflag, size = 0x4, scoped, tag = 'scoped memory for sgformer_forward.3']
    #allocation6 [shape = 'u8[32768]{0}', space=vmem, size = 0x8000, scoped, tag = 'input window, operand 4, single buffered']
    #allocation7 [shape = 'u8[512]{0}', space=vmem, size = 0x400, scoped, tag = 'input window, operand 5, single buffered']
    #allocation8 [shape = 's32[1]{0}', space=sflag, size = 0x4, scoped, tag = 'scoped memory for sgformer_forward.3']
    %11 = vsyncpa [#allocation3], 0
    %12 = vsyncpa [#allocation5], 0
    %13 = vsyncpa [#allocation8], 0
    // Predicated region
    $region2: #{sgformer_forward.3} parent=1 // pred_check
      _
    $region3: #{sgformer_forward.3} parent=1 // pred_check_branch
      %15 = sbr.rel (0) target = $region5
    $region4: #{sgformer_forward.3} parent=1 // pred_region
      _
    $region5: #{sgformer_forward.3} parent=1 // pred_fallthru
      _
    // Predicated region
    $region6: #{sgformer_forward.3} parent=1 // pred_check
      _
    $region7: #{sgformer_forward.3} parent=1 // pred_check_branch
      %17 = sbr.rel (0) target = $region9
    $region8: #{sgformer_forward.3} parent=1 // pred_region
      %s19 = ssub.s32 1024, 1024
      %20 = vsyncadd [#allocation3], %s19
      %s21 = sshll.u32 [#allocation2], 4
      %s22 = int_to_ptr.vmem [resolvable:$true] %s21
      %27 = dma.hbm_to_vmem [thread:$0]  %s1, 1024, %s22, [#allocation3], 64, 64, 4
    $region9: #{sgformer_forward.3} parent=1 // pred_fallthru
      _
    // Predicated region
    $region10: #{sgformer_forward.3} parent=1 // pred_check
      _
    $region11: #{sgformer_forward.3} parent=1 // pred_check_branch
      %29 = sbr.rel (0) target = $region13
    $region12: #{sgformer_forward.3} parent=1 // pred_region
      %s31 = ssub.s32 16, 16
      %32 = vsyncadd [#allocation5], %s31
      %s34 = sshll.u32 [#allocation4], 4
      %s35 = int_to_ptr.vmem [resolvable:$true] %s34
      %37 = dma.hbm_to_vmem [thread:$0]  %s2, 16, %s35, [#allocation5]
    $region13: #{sgformer_forward.3} parent=1 // pred_fallthru
      _
    // Predicated region
    $region14: #{sgformer_forward.3} parent=1 // pred_check
      _
    $region15: #{sgformer_forward.3} parent=1 // pred_check_branch
      %39 = sbr.rel (0) target = $region17
    $region16: #{sgformer_forward.3} parent=1 // pred_region
      _
    $region17: #{sgformer_forward.3} parent=1 // pred_fallthru
      _
    // Predicated region
    $region18: #{sgformer_forward.3} parent=1 // pred_check
      _
    $region19: #{sgformer_forward.3} parent=1 // pred_check_branch
      %41 = sbr.rel (0) target = $region21
    $region20: #{sgformer_forward.3} parent=1 // pred_region
      %s43 = ssub.s32 1024, 1024
      %44 = vsyncadd [#allocation5], %s43
      %s45 = sshll.u32 [#allocation6], 4
      %s46 = int_to_ptr.vmem [resolvable:$true] %s45
      %51 = dma.hbm_to_vmem [thread:$0]  %s4, 1024, %s46, [#allocation5], 64, 64, 4
    $region21: #{sgformer_forward.3} parent=1 // pred_fallthru
      _
    // Predicated region
    $region22: #{sgformer_forward.3} parent=1 // pred_check
      _
    $region23: #{sgformer_forward.3} parent=1 // pred_check_branch
      %53 = sbr.rel (0) target = $region25
    $region24: #{sgformer_forward.3} parent=1 // pred_region
      %s55 = ssub.s32 16, 16
      %56 = vsyncadd [#allocation8], %s55
      %s58 = sshll.u32 [#allocation7], 4
      %s59 = int_to_ptr.vmem [resolvable:$true] %s58
      %61 = dma.hbm_to_vmem [thread:$0]  %s5, 16, %s59, [#allocation8]
    $region25: #{sgformer_forward.3} parent=1 // pred_fallthru
      _
    // Predicated region
    $region26: #{sgformer_forward.3} parent=1 // pred_check
      _
    $region27: #{sgformer_forward.3} parent=1 // pred_check_branch
      %63 = sbr.rel (0) target = $region29
    $region28: #{sgformer_forward.3} parent=1 // pred_region
      %64 = dma.done [#allocation3], 1024
    $region29: #{sgformer_forward.3} parent=1 // pred_fallthru
      _
    // Predicated region
    $region30: #{sgformer_forward.3} parent=1 // pred_check
      _
    $region31: #{sgformer_forward.3} parent=1 // pred_check_branch
      %66 = sbr.rel (0) target = $region33
    $region32: #{sgformer_forward.3} parent=1 // pred_region
      %67 = dma.done [#allocation5], 16
    $region33: #{sgformer_forward.3} parent=1 // pred_fallthru
      _
    // Predicated region
    $region34: #{sgformer_forward.3} parent=1 // pred_check
      _
    $region35: #{sgformer_forward.3} parent=1 // pred_check_branch
      %69 = sbr.rel (0) target = $region37
    $region36: #{sgformer_forward.3} parent=1 // pred_region
      %70 = dma.done [#allocation5], 1024
    $region37: #{sgformer_forward.3} parent=1 // pred_fallthru
      _
    // Predicated region
    $region38: #{sgformer_forward.3} parent=1 // pred_check
      _
    $region39: #{sgformer_forward.3} parent=1 // pred_check_branch
      %72 = sbr.rel (0) target = $region41
    $region40: #{sgformer_forward.3} parent=1 // pred_region
      %73 = dma.done [#allocation8], 16
    $region41: #{sgformer_forward.3} parent=1 // pred_fallthru
      _
    %v75 = vld [vmem:[%s0] sm:$0xff]
    %v76 = vpack.c.bf16 %v75, %v75
    %v77 = vld [vmem:[#allocation2] sm:$0xf]
    %v78 = vld [vmem:[#allocation2 + $0x4] sm:$0xf]
    %v79 = vld [vmem:[#allocation2 + $0x8] sm:$0xf]
    %v80 = vld [vmem:[#allocation2 + $0xc] sm:$0xf]
    %v81 = vld [vmem:[#allocation2 + $0x10] sm:$0xf]
    %v82 = vld [vmem:[#allocation2 + $0x14] sm:$0xf]
    %v83 = vld [vmem:[#allocation2 + $0x18] sm:$0xf]
    %v84 = vld [vmem:[#allocation2 + $0x1c] sm:$0xf]
    %v85 = vld [vmem:[#allocation2 + $0x20] sm:$0xf]
    %v86 = vld [vmem:[#allocation2 + $0x24] sm:$0xf]
    %v87 = vld [vmem:[#allocation2 + $0x28] sm:$0xf]
    %v88 = vld [vmem:[#allocation2 + $0x2c] sm:$0xf]
    %v89 = vld [vmem:[#allocation2 + $0x30] sm:$0xf]
    %v90 = vld [vmem:[#allocation2 + $0x34] sm:$0xf]
    %v91 = vld [vmem:[#allocation2 + $0x38] sm:$0xf]
    %v92 = vld [vmem:[#allocation2 + $0x3c] sm:$0xf]
    %v93 = vld [vmem:[#allocation4] sm:$0x1]
    %v95 = vlaneseq
    %v96 = vshrl.u32 %v95, 7
    %v97 = vsub.s32 0, %v96
    %v98 = vrot.slane %v93, %v97
    %v116 = vunpack.c.l.b16 %v77
    %v117 = vunpack.c.l.b16 %v78
    %v118 = vunpack.c.l.b16 %v79
    %v119 = vunpack.c.l.b16 %v80
    %v120 = vunpack.c.l.b16 %v81
    %v121 = vunpack.c.l.b16 %v82
    %v122 = vunpack.c.l.b16 %v83
    %v123 = vunpack.c.l.b16 %v84
    %v124 = vunpack.c.l.b16 %v85
    %v125 = vunpack.c.l.b16 %v86
    %v126 = vunpack.c.l.b16 %v87
    %v127 = vunpack.c.l.b16 %v88
    %v128 = vunpack.c.l.b16 %v89
    %v129 = vunpack.c.l.b16 %v90
    %v130 = vunpack.c.l.b16 %v91
    %v131 = vunpack.c.l.b16 %v92
    %v132 = vpack.c.b16 %v117, %v116
    %v133 = vpack.c.b16 %v119, %v118
    %v134 = vpack.c.b16 %v121, %v120
    %v135 = vpack.c.b16 %v123, %v122
    %v136 = vpack.c.b16 %v125, %v124
    %v137 = vpack.c.b16 %v127, %v126
    %v138 = vpack.c.b16 %v129, %v128
    %v139 = vpack.c.b16 %v131, %v130
    %148 = vmatprep.subr.bf16.mxu0 0
    %149 = vmatpush1.bf16.msra.mxu0 %v139
    %150 = vmatprep.subr.bf16.mxu0 0
    %151 = vmatpush1.bf16.msra.mxu0 %v138
    %152 = vmatprep.subr.bf16.mxu0 0
    %153 = vmatpush1.bf16.msra.mxu0 %v137
    %154 = vmatprep.subr.bf16.mxu0 0
    %155 = vmatpush1.bf16.msra.mxu0 %v136
    %156 = vmatprep.subr.bf16.mxu0 0
    %157 = vmatpush1.bf16.msra.mxu0 %v135
    %158 = vmatprep.subr.bf16.mxu0 0
    %159 = vmatpush1.bf16.msra.mxu0 %v134
    %160 = vmatprep.subr.bf16.mxu0 0
    %161 = vmatpush1.bf16.msra.mxu0 %v133
    %162 = vmatprep.subr.bf16.mxu0 0
    %163 = vmatpush1.bf16.msra.mxu0 %v132
    %164 = vmatprep.subr.bf16.mxu0 0
    %165 = vmatpush2.bf16.msra.mxu0 0
    %166 = vmatprep.subr.bf16.mxu0 0
    %167 = vmatpush2.bf16.msra.mxu0 0
    %168 = vmatprep.subr.bf16.mxu0 0
    %169 = vmatpush2.bf16.msra.mxu0 0
    %170 = vmatprep.subr.bf16.mxu0 0
    %171 = vmatpush2.bf16.msra.mxu0 0
    %172 = vmatprep.subr.bf16.mxu0 0
    %173 = vmatpush2.bf16.msra.mxu0 0
    %174 = vmatprep.subr.bf16.mxu0 0
    %175 = vmatpush2.bf16.msra.mxu0 0
    %176 = vmatprep.subr.bf16.mxu0 0
    %177 = vmatpush2.bf16.msra.mxu0 0
    %178 = vmatprep.subr.bf16.mxu0 0
    %179 = vmatpush2.bf16.msra.mxu0 0
    %180 = vmatprep.mubr.bf16.mxu0 0
    %181 = vmatmul.mubr.bf16.gmra.mxu0 %v76
    %v182 = vpop.f32.mrf.mxu0
    %v183 = vadd.f32 %v98, %v182
    %v184 = vpop.f32.mrf.mxu0
    %v185 = vpop.f32.mrf.mxu0
    %v186 = vpop.f32.mrf.mxu0
    %187 = vdwg.mxu0
    %v188 = vpack.c.bf16 %v183, %v183
    %189 = vst [vmem:[%s6] sm:$0xf] %v188
    %v190 = vld [vmem:[%s3] sm:$0xff]
    %v191 = vpack.c.bf16 %v190, %v190
    %v192 = vld [vmem:[#allocation6] sm:$0xf]
    %v193 = vld [vmem:[#allocation6 + $0x4] sm:$0xf]
    %v194 = vld [vmem:[#allocation6 + $0x8] sm:$0xf]
    %v195 = vld [vmem:[#allocation6 + $0xc] sm:$0xf]
    %v196 = vld [vmem:[#allocation6 + $0x10] sm:$0xf]
    %v197 = vld [vmem:[#allocation6 + $0x14] sm:$0xf]
    %v198 = vld [vmem:[#allocation6 + $0x18] sm:$0xf]
    %v199 = vld [vmem:[#allocation6 + $0x1c] sm:$0xf]
    %v200 = vld [vmem:[#allocation6 + $0x20] sm:$0xf]
    %v201 = vld [vmem:[#allocation6 + $0x24] sm:$0xf]
    %v202 = vld [vmem:[#allocation6 + $0x28] sm:$0xf]
    %v203 = vld [vmem:[#allocation6 + $0x2c] sm:$0xf]
    %v204 = vld [vmem:[#allocation6 + $0x30] sm:$0xf]
    %v205 = vld [vmem:[#allocation6 + $0x34] sm:$0xf]
    %v206 = vld [vmem:[#allocation6 + $0x38] sm:$0xf]
    %v207 = vld [vmem:[#allocation6 + $0x3c] sm:$0xf]
    %v208 = vld [vmem:[#allocation7] sm:$0x1]
    %v210 = vlaneseq
    %v211 = vshrl.u32 %v210, 7
    %v212 = vsub.s32 0, %v211
    %v213 = vrot.slane %v208, %v212
    %v231 = vunpack.c.l.b16 %v192
    %v232 = vunpack.c.l.b16 %v193
    %v233 = vunpack.c.l.b16 %v194
    %v234 = vunpack.c.l.b16 %v195
    %v235 = vunpack.c.l.b16 %v196
    %v236 = vunpack.c.l.b16 %v197
    %v237 = vunpack.c.l.b16 %v198
    %v238 = vunpack.c.l.b16 %v199
    %v239 = vunpack.c.l.b16 %v200
    %v240 = vunpack.c.l.b16 %v201
    %v241 = vunpack.c.l.b16 %v202
    %v242 = vunpack.c.l.b16 %v203
    %v243 = vunpack.c.l.b16 %v204
    %v244 = vunpack.c.l.b16 %v205
    %v245 = vunpack.c.l.b16 %v206
    %v246 = vunpack.c.l.b16 %v207
    %v247 = vpack.c.b16 %v232, %v231
    %v248 = vpack.c.b16 %v234, %v233
    %v249 = vpack.c.b16 %v236, %v235
    %v250 = vpack.c.b16 %v238, %v237
    %v251 = vpack.c.b16 %v240, %v239
    %v252 = vpack.c.b16 %v242, %v241
    %v253 = vpack.c.b16 %v244, %v243
    %v254 = vpack.c.b16 %v246, %v245
    %263 = vmatprep.subr.bf16.mxu0 0
    %264 = vmatpush1.bf16.msra.mxu0 %v254
    %265 = vmatprep.subr.bf16.mxu0 0
    %266 = vmatpush1.bf16.msra.mxu0 %v253
    %267 = vmatprep.subr.bf16.mxu0 0
    %268 = vmatpush1.bf16.msra.mxu0 %v252
    %269 = vmatprep.subr.bf16.mxu0 0
    %270 = vmatpush1.bf16.msra.mxu0 %v251
    %271 = vmatprep.subr.bf16.mxu0 0
    %272 = vmatpush1.bf16.msra.mxu0 %v250
    %273 = vmatprep.subr.bf16.mxu0 0
    %274 = vmatpush1.bf16.msra.mxu0 %v249
    %275 = vmatprep.subr.bf16.mxu0 0
    %276 = vmatpush1.bf16.msra.mxu0 %v248
    %277 = vmatprep.subr.bf16.mxu0 0
    %278 = vmatpush1.bf16.msra.mxu0 %v247
    %279 = vmatprep.subr.bf16.mxu0 0
    %280 = vmatpush2.bf16.msra.mxu0 0
    %281 = vmatprep.subr.bf16.mxu0 0
    %282 = vmatpush2.bf16.msra.mxu0 0
    %283 = vmatprep.subr.bf16.mxu0 0
    %284 = vmatpush2.bf16.msra.mxu0 0
    %285 = vmatprep.subr.bf16.mxu0 0
    %286 = vmatpush2.bf16.msra.mxu0 0
    %287 = vmatprep.subr.bf16.mxu0 0
    %288 = vmatpush2.bf16.msra.mxu0 0
    %289 = vmatprep.subr.bf16.mxu0 0
    %290 = vmatpush2.bf16.msra.mxu0 0
    %291 = vmatprep.subr.bf16.mxu0 0
    %292 = vmatpush2.bf16.msra.mxu0 0
    %293 = vmatprep.subr.bf16.mxu0 0
    %294 = vmatpush2.bf16.msra.mxu0 0
    %295 = vmatprep.mubr.bf16.mxu0 0
    %296 = vmatmul.mubr.bf16.gmra.mxu0 %v191
    %v297 = vpop.f32.mrf.mxu0
    %v298 = vadd.f32 %v213, %v297
    %v299 = vpop.f32.mrf.mxu0
    %v300 = vpop.f32.mrf.mxu0
    %v301 = vpop.f32.mrf.mxu0
    %302 = vdwg.mxu0
    %v303 = vpack.c.bf16 %v298, %v298
    %304 = vst [vmem:[%s6 + $0x4] sm:$0xf] %v303
    // Predicated region
    $region42: #{sgformer_forward.3} parent=1 // pred_check
      _
    $region43: #{sgformer_forward.3} parent=1 // pred_check_branch
      %306 = sbr.rel (0) target = $region45
    $region44: #{sgformer_forward.3} parent=1 // pred_region
      _
    $region45: #{sgformer_forward.3} parent=1 // pred_fallthru
      _
    // Predicated region
    $region46: #{sgformer_forward.3} parent=1 // pred_check
      _
    $region47: #{sgformer_forward.3} parent=1 // pred_check_branch
      %308 = sbr.rel (0) target = $region49
    $region48: #{sgformer_forward.3} parent=1 // pred_region
      _
    $region49: #{sgformer_forward.3} parent=1 // pred_fallthru
      _
    %309 = vsyncpa [#allocation3], 1
    %310 = vsyncpa [#allocation5], 1
    %311 = vsyncpa [#allocation8], 1

// kernel: sgformer_forward.5
$region0: #{sgformer_forward.5}
  #allocation0 [shape = 'u32[]', space=smem, size = 0x4, offset = 0x4, fixed_abs, tag = 'smem constant byte address 0x4 - core index']
  #allocation1 [shape = 'u32[144,128]{1,0:T(1,128)}', space=vmem, size = 0x12000, scoped, tag = 'internal scratch']
  %s0 = inlined_call_operand.vmem [shape: bf16[16,128], index: 0, kind: input, shape index: {}]
  %s1 = inlined_call_operand.vmem [shape: bf16[16,16], index: 1, kind: input, shape index: {}]
  %s2 = inlined_call_operand.vmem [shape: bf16[16,128], index: 2, kind: input, shape index: {}]
  %s3 = inlined_call_operand.vmem [shape: bf16[128,128], index: 3, kind: input, shape index: {}]
  %s4 = inlined_call_operand.vmem [shape: f32[1,128], index: 4, kind: input, shape index: {}]
  %s5 = inlined_call_operand.vmem [shape: f32[4,1,128], index: 5, kind: input, shape index: {}]
  %s6 = inlined_call_operand.vmem [shape: f32[4,1,128], index: 6, kind: input, shape index: {}]
  %s7 = inlined_call_operand.vmem [shape: bf16[3,128,128], index: 7, kind: input, shape index: {}]
  %s8 = inlined_call_operand.vmem [shape: f32[3,1,128], index: 8, kind: input, shape index: {}]
  %s9 = inlined_call_operand.vmem [shape: bf16[128,128], index: 9, kind: input, shape index: {}]
  %s10 = inlined_call_operand.vmem [shape: f32[1,128], index: 10, kind: input, shape index: {}]
  %s11 = inlined_call_operand.vmem [shape: f32[16,128], index: 11, kind: output, shape index: {}]
  %s12 = sld [smem:[#allocation0]]
  $region54: #{sgformer_forward.5} parent=0
    _
  %s14 = ssub.s32 1, %s12
  %s15 = scalar_select 0, %s14, %s12
  // Predicated region
  $region2: #{sgformer_forward.5} parent=0 // pred_check
    _
  $region3: #{sgformer_forward.5} parent=0 // pred_check_branch
    %17 = sbr.rel (0) target = $region5
  $region4: #{sgformer_forward.5} parent=0 // pred_region
    _
  $region5: #{sgformer_forward.5} parent=0 // pred_fallthru
    _
  // Predicated region
  $region6: #{sgformer_forward.5} parent=0 // pred_check
    _
  $region7: #{sgformer_forward.5} parent=0 // pred_check_branch
    %19 = sbr.rel (0) target = $region9
  $region8: #{sgformer_forward.5} parent=0 // pred_region
    _
  $region9: #{sgformer_forward.5} parent=0 // pred_fallthru
    _
  // Predicated region
  $region10: #{sgformer_forward.5} parent=0 // pred_check
    _
  $region11: #{sgformer_forward.5} parent=0 // pred_check_branch
    %21 = sbr.rel (0) target = $region13
  $region12: #{sgformer_forward.5} parent=0 // pred_region
    _
  $region13: #{sgformer_forward.5} parent=0 // pred_fallthru
    _
  // Predicated region
  $region14: #{sgformer_forward.5} parent=0 // pred_check
    _
  $region15: #{sgformer_forward.5} parent=0 // pred_check_branch
    %23 = sbr.rel (0) target = $region17
  $region16: #{sgformer_forward.5} parent=0 // pred_region
    _
  $region17: #{sgformer_forward.5} parent=0 // pred_fallthru
    _
  // Predicated region
  $region18: #{sgformer_forward.5} parent=0 // pred_check
    _
  $region19: #{sgformer_forward.5} parent=0 // pred_check_branch
    %25 = sbr.rel (0) target = $region21
  $region20: #{sgformer_forward.5} parent=0 // pred_region
    _
  $region21: #{sgformer_forward.5} parent=0 // pred_fallthru
    _
  // Predicated region
  $region22: #{sgformer_forward.5} parent=0 // pred_check
    _
  $region23: #{sgformer_forward.5} parent=0 // pred_check_branch
    %27 = sbr.rel (0) target = $region25
  $region24: #{sgformer_forward.5} parent=0 // pred_region
    _
  $region25: #{sgformer_forward.5} parent=0 // pred_fallthru
    _
  // Predicated region
  $region26: #{sgformer_forward.5} parent=0 // pred_check
    _
  $region27: #{sgformer_forward.5} parent=0 // pred_check_branch
    %29 = sbr.rel (0) target = $region29
  $region28: #{sgformer_forward.5} parent=0 // pred_region
    _
  $region29: #{sgformer_forward.5} parent=0 // pred_fallthru
    _
  // Predicated region
  $region30: #{sgformer_forward.5} parent=0 // pred_check
    _
  $region31: #{sgformer_forward.5} parent=0 // pred_check_branch
    %31 = sbr.rel (0) target = $region33
  $region32: #{sgformer_forward.5} parent=0 // pred_region
    _
  $region33: #{sgformer_forward.5} parent=0 // pred_fallthru
    _
  // Predicated region
  $region34: #{sgformer_forward.5} parent=0 // pred_check
    _
  $region35: #{sgformer_forward.5} parent=0 // pred_check_branch
    %33 = sbr.rel (0) target = $region37
  $region36: #{sgformer_forward.5} parent=0 // pred_region
    _
  $region37: #{sgformer_forward.5} parent=0 // pred_fallthru
    _
  // Predicated region
  $region38: #{sgformer_forward.5} parent=0 // pred_check
    _
  $region39: #{sgformer_forward.5} parent=0 // pred_check_branch
    %35 = sbr.rel (0) target = $region41
  $region40: #{sgformer_forward.5} parent=0 // pred_region
    _
  $region41: #{sgformer_forward.5} parent=0 // pred_fallthru
    _
  // Predicated region
  $region42: #{sgformer_forward.5} parent=0 // pred_check
    _
  $region43: #{sgformer_forward.5} parent=0 // pred_check_branch
    %37 = sbr.rel (0) target = $region45
  $region44: #{sgformer_forward.5} parent=0 // pred_region
    _
  $region45: #{sgformer_forward.5} parent=0 // pred_fallthru
    _
  %v39 = vld [vmem:[%s1] sm:$0xf]
  %v40 = vld [vmem:[%s1 + $0x4] sm:$0xf]
  %v41 = vld [vmem:[%s0] sm:$0xf]
  %v42 = vld [vmem:[%s0 + $0x4] sm:$0xf]
  %v43 = vld [vmem:[%s3] sm:$0xf]
  %v44 = vld [vmem:[%s3 + $0x4] sm:$0xf]
  %v45 = vld [vmem:[%s3 + $0x8] sm:$0xf]
  %v46 = vld [vmem:[%s3 + $0xc] sm:$0xf]
  %v47 = vld [vmem:[%s3 + $0x10] sm:$0xf]
  %v48 = vld [vmem:[%s3 + $0x14] sm:$0xf]
  %v49 = vld [vmem:[%s3 + $0x18] sm:$0xf]
  %v50 = vld [vmem:[%s3 + $0x1c] sm:$0xf]
  %v51 = vld [vmem:[%s3 + $0x20] sm:$0xf]
  %v52 = vld [vmem:[%s3 + $0x24] sm:$0xf]
  %v53 = vld [vmem:[%s3 + $0x28] sm:$0xf]
  %v54 = vld [vmem:[%s3 + $0x2c] sm:$0xf]
  %v55 = vld [vmem:[%s3 + $0x30] sm:$0xf]
  %v56 = vld [vmem:[%s3 + $0x34] sm:$0xf]
  %v57 = vld [vmem:[%s3 + $0x38] sm:$0xf]
  %v58 = vld [vmem:[%s3 + $0x3c] sm:$0xf]
  %v59 = vld [vmem:[%s4] sm:$0x1]
  %v61 = vlaneseq
  %v62 = vshrl.u32 %v61, 7
  %v63 = vsub.s32 0, %v62
  %v64 = vrot.slane %v59, %v63
  %v68 = vunpack.c.l.b16 %v41
  %v69 = vunpack.c.l.b16 %v42
  %v70 = vpack.c.b16 %v69, %v68
  %v88 = vunpack.c.l.b16 %v43
  %v89 = vunpack.c.l.b16 %v44
  %v90 = vunpack.c.l.b16 %v45
  %v91 = vunpack.c.l.b16 %v46
  %v92 = vunpack.c.l.b16 %v47
  %v93 = vunpack.c.l.b16 %v48
  %v94 = vunpack.c.l.b16 %v49
  %v95 = vunpack.c.l.b16 %v50
  %v96 = vunpack.c.l.b16 %v51
  %v97 = vunpack.c.l.b16 %v52
  %v98 = vunpack.c.l.b16 %v53
  %v99 = vunpack.c.l.b16 %v54
  %v100 = vunpack.c.l.b16 %v55
  %v101 = vunpack.c.l.b16 %v56
  %v102 = vunpack.c.l.b16 %v57
  %v103 = vunpack.c.l.b16 %v58
  %v104 = vpack.c.b16 %v89, %v88
  %v105 = vpack.c.b16 %v91, %v90
  %v106 = vpack.c.b16 %v93, %v92
  %v107 = vpack.c.b16 %v95, %v94
  %v108 = vpack.c.b16 %v97, %v96
  %v109 = vpack.c.b16 %v99, %v98
  %v110 = vpack.c.b16 %v101, %v100
  %v111 = vpack.c.b16 %v103, %v102
  %120 = vmatprep.subr.bf16.mxu0 0
  %121 = vmatpush1.bf16.msra.mxu0 %v111
  %122 = vmatprep.subr.bf16.mxu0 0
  %123 = vmatpush1.bf16.msra.mxu0 %v110
  %124 = vmatprep.subr.bf16.mxu0 0
  %125 = vmatpush1.bf16.msra.mxu0 %v109
  %126 = vmatprep.subr.bf16.mxu0 0
  %127 = vmatpush1.bf16.msra.mxu0 %v108
  %128 = vmatprep.subr.bf16.mxu0 0
  %129 = vmatpush1.bf16.msra.mxu0 %v107
  %130 = vmatprep.subr.bf16.mxu0 0
  %131 = vmatpush1.bf16.msra.mxu0 %v106
  %132 = vmatprep.subr.bf16.mxu0 0
  %133 = vmatpush1.bf16.msra.mxu0 %v105
  %134 = vmatprep.subr.bf16.mxu0 0
  %135 = vmatpush1.bf16.msra.mxu0 %v104
  %136 = vmatprep.subr.bf16.mxu0 0
  %137 = vmatpush2.bf16.msra.mxu0 0
  %138 = vmatprep.subr.bf16.mxu0 0
  %139 = vmatpush2.bf16.msra.mxu0 0
  %140 = vmatprep.subr.bf16.mxu0 0
  %141 = vmatpush2.bf16.msra.mxu0 0
  %142 = vmatprep.subr.bf16.mxu0 0
  %143 = vmatpush2.bf16.msra.mxu0 0
  %144 = vmatprep.subr.bf16.mxu0 0
  %145 = vmatpush2.bf16.msra.mxu0 0
  %146 = vmatprep.subr.bf16.mxu0 0
  %147 = vmatpush2.bf16.msra.mxu0 0
  %148 = vmatprep.subr.bf16.mxu0 0
  %149 = vmatpush2.bf16.msra.mxu0 0
  %150 = vmatprep.subr.bf16.mxu0 0
  %151 = vmatpush2.bf16.msra.mxu0 0
  %152 = vmatprep.mubr.bf16.mxu0 0
  %153 = vmatmul.mubr.bf16.gmra.mxu0 %v70
  %v154 = vpop.f32.mrf.mxu0
  %v155 = vadd.f32 %v64, %v154
  %v156 = vpop.f32.mrf.mxu0
  %v157 = vpop.f32.mrf.mxu0
  %v158 = vadd.f32 %v64, %v157
  %v159 = vpop.f32.mrf.mxu0
  %160 = vdwg.mxu0
  %v161 = vld [vmem:[%s5] sm:$0x1]
  %v163 = vlaneseq
  %v164 = vshrl.u32 %v163, 7
  %v165 = vsub.s32 0, %v164
  %v166 = vrot.slane %v161, %v165
  %v168 = vmul.f32 %v155, %v166
  %v169 = vmul.f32 %v158, %v166
  %v170 = vld [vmem:[%s6] sm:$0x1]
  %v172 = vlaneseq
  %v173 = vshrl.u32 %v172, 7
  %v174 = vsub.s32 0, %v173
  %v175 = vrot.slane %v170, %v174
  %v177 = vadd.f32 %v168, %v175
  %v178 = vadd.f32 %v169, %v175
  %v179 = vmax.f32 %v177, 0.0
  %v180 = vmax.f32 %v178, 0.0
  %v181 = vpack.c.bf16 %v180, %v179
  %v182 = vld [vmem:[%s7] sm:$0xf]
  %v183 = vld [vmem:[%s7 + $0x4] sm:$0xf]
  %v184 = vld [vmem:[%s7 + $0x8] sm:$0xf]
  %v185 = vld [vmem:[%s7 + $0xc] sm:$0xf]
  %v186 = vld [vmem:[%s7 + $0x10] sm:$0xf]
  %v187 = vld [vmem:[%s7 + $0x14] sm:$0xf]
  %v188 = vld [vmem:[%s7 + $0x18] sm:$0xf]
  %v189 = vld [vmem:[%s7 + $0x1c] sm:$0xf]
  %v190 = vld [vmem:[%s7 + $0x20] sm:$0xf]
  %v191 = vld [vmem:[%s7 + $0x24] sm:$0xf]
  %v192 = vld [vmem:[%s7 + $0x28] sm:$0xf]
  %v193 = vld [vmem:[%s7 + $0x2c] sm:$0xf]
  %v194 = vld [vmem:[%s7 + $0x30] sm:$0xf]
  %v195 = vld [vmem:[%s7 + $0x34] sm:$0xf]
  %v196 = vld [vmem:[%s7 + $0x38] sm:$0xf]
  %v197 = vld [vmem:[%s7 + $0x3c] sm:$0xf]
  %v214 = vunpack.c.l.b16 %v182
  %v215 = vunpack.c.l.b16 %v183
  %v216 = vunpack.c.l.b16 %v184
  %v217 = vunpack.c.l.b16 %v185
  %v218 = vunpack.c.l.b16 %v186
  %v219 = vunpack.c.l.b16 %v187
  %v220 = vunpack.c.l.b16 %v188
  %v221 = vunpack.c.l.b16 %v189
  %v222 = vunpack.c.l.b16 %v190
  %v223 = vunpack.c.l.b16 %v191
  %v224 = vunpack.c.l.b16 %v192
  %v225 = vunpack.c.l.b16 %v193
  %v226 = vunpack.c.l.b16 %v194
  %v227 = vunpack.c.l.b16 %v195
  %v228 = vunpack.c.l.b16 %v196
  %v229 = vunpack.c.l.b16 %v197
  %v230 = vpack.c.b16 %v215, %v214
  %v231 = vpack.c.b16 %v217, %v216
  %v232 = vpack.c.b16 %v219, %v218
  %v233 = vpack.c.b16 %v221, %v220
  %v234 = vpack.c.b16 %v223, %v222
  %v235 = vpack.c.b16 %v225, %v224
  %v236 = vpack.c.b16 %v227, %v226
  %v237 = vpack.c.b16 %v229, %v228
  %246 = vmatprep.subr.bf16.mxu0 0
  %247 = vmatpush1.bf16.msra.mxu0 %v237
  %248 = vmatprep.subr.bf16.mxu0 0
  %249 = vmatpush1.bf16.msra.mxu0 %v236
  %250 = vmatprep.subr.bf16.mxu0 0
  %251 = vmatpush1.bf16.msra.mxu0 %v235
  %252 = vmatprep.subr.bf16.mxu0 0
  %253 = vmatpush1.bf16.msra.mxu0 %v234
  %254 = vmatprep.subr.bf16.mxu0 0
  %255 = vmatpush1.bf16.msra.mxu0 %v233
  %256 = vmatprep.subr.bf16.mxu0 0
  %257 = vmatpush1.bf16.msra.mxu0 %v232
  %258 = vmatprep.subr.bf16.mxu0 0
  %259 = vmatpush1.bf16.msra.mxu0 %v231
  %260 = vmatprep.subr.bf16.mxu0 0
  %261 = vmatpush1.bf16.msra.mxu0 %v230
  %262 = vmatprep.subr.bf16.mxu0 0
  %263 = vmatpush2.bf16.msra.mxu0 0
  %264 = vmatprep.subr.bf16.mxu0 0
  %265 = vmatpush2.bf16.msra.mxu0 0
  %266 = vmatprep.subr.bf16.mxu0 0
  %267 = vmatpush2.bf16.msra.mxu0 0
  %268 = vmatprep.subr.bf16.mxu0 0
  %269 = vmatpush2.bf16.msra.mxu0 0
  %270 = vmatprep.subr.bf16.mxu0 0
  %271 = vmatpush2.bf16.msra.mxu0 0
  %272 = vmatprep.subr.bf16.mxu0 0
  %273 = vmatpush2.bf16.msra.mxu0 0
  %274 = vmatprep.subr.bf16.mxu0 0
  %275 = vmatpush2.bf16.msra.mxu0 0
  %276 = vmatprep.subr.bf16.mxu0 0
  %277 = vmatpush2.bf16.msra.mxu0 0
  %278 = vmatprep.mubr.bf16.mxu0 0
  %279 = vmatmul.mubr.bf16.gmra.mxu0 %v181
  %v280 = vpop.f32.mrf.mxu0
  %v281 = vadd.f32 0.0, %v280
  %v282 = vpop.f32.mrf.mxu0
  %v283 = vpop.f32.mrf.mxu0
  %v284 = vadd.f32 0.0, %v283
  %v285 = vpop.f32.mrf.mxu0
  %286 = vdwg.mxu0
  %v287 = vpack.c.bf16 %v284, %v281
  %v288 = vld [vmem:[%s8] sm:$0x1]
  %v290 = vlaneseq
  %v291 = vshrl.u32 %v290, 7
  %v292 = vsub.s32 0, %v291
  %v293 = vrot.slane %v288, %v292
  %v297 = vunpack.c.l.b16 %v39
  %v298 = vunpack.c.l.b16 %v40
  %v299 = vpack.c.b16 %v298, %v297
  %vm300 = vcmask 130048
  %v302 = vsel %vm300, %v299, 0
  %304 = vmatprep.subr.bf16.mxu0 0
  %305 = vmatpush1.bf16.msra.mxu0 0
  %306 = vmatprep.subr.bf16.mxu0 0
  %307 = vmatpush1.bf16.msra.mxu0 0
  %308 = vmatprep.subr.bf16.mxu0 0
  %309 = vmatpush1.bf16.msra.mxu0 0
  %310 = vmatprep.subr.bf16.mxu0 0
  %311 = vmatpush1.bf16.msra.mxu0 0
  %312 = vmatprep.subr.bf16.mxu0 0
  %313 = vmatpush1.bf16.msra.mxu0 0
  %314 = vmatprep.subr.bf16.mxu0 0
  %315 = vmatpush1.bf16.msra.mxu0 0
  %316 = vmatprep.subr.bf16.mxu0 0
  %317 = vmatpush1.bf16.msra.mxu0 0
  %318 = vmatprep.subr.bf16.mxu0 0
  %319 = vmatpush1.bf16.msra.mxu0 %v287
  %320 = vmatprep.subr.bf16.mxu0 0
  %321 = vmatpush2.bf16.msra.mxu0 0
  %322 = vmatprep.subr.bf16.mxu0 0
  %323 = vmatpush2.bf16.msra.mxu0 0
  %324 = vmatprep.subr.bf16.mxu0 0
  %325 = vmatpush2.bf16.msra.mxu0 0
  %326 = vmatprep.subr.bf16.mxu0 0
  %327 = vmatpush2.bf16.msra.mxu0 0
  %328 = vmatprep.subr.bf16.mxu0 0
  %329 = vmatpush2.bf16.msra.mxu0 0
  %330 = vmatprep.subr.bf16.mxu0 0
  %331 = vmatpush2.bf16.msra.mxu0 0
  %332 = vmatprep.subr.bf16.mxu0 0
  %333 = vmatpush2.bf16.msra.mxu0 0
  %334 = vmatprep.subr.bf16.mxu0 0
  %335 = vmatpush2.bf16.msra.mxu0 0
  %336 = vmatprep.mubr.bf16.mxu0 0
  %337 = vmatmul.mubr.bf16.gmra.mxu0 %v302
  %v338 = vpop.f32.mrf.mxu0
  %v339 = vadd.f32 %v293, %v338
  %v340 = vpop.f32.mrf.mxu0
  %v341 = vpop.f32.mrf.mxu0
  %v342 = vadd.f32 %v293, %v341
  %v343 = vpop.f32.mrf.mxu0
  %344 = vdwg.mxu0
  %s345 = scalar_lea.vmem %s5, 1
  %v346 = vld [vmem:[%s345] sm:$0x1]
  %v348 = vlaneseq
  %v349 = vshrl.u32 %v348, 7
  %v350 = vsub.s32 0, %v349
  %v351 = vrot.slane %v346, %v350
  %v353 = vmul.f32 %v339, %v351
  %v354 = vmul.f32 %v342, %v351
  %s355 = scalar_lea.vmem %s6, 1
  %v356 = vld [vmem:[%s355] sm:$0x1]
  %v358 = vlaneseq
  %v359 = vshrl.u32 %v358, 7
  %v360 = vsub.s32 0, %v359
  %v361 = vrot.slane %v356, %v360
  %v363 = vadd.f32 %v353, %v361
  %v364 = vadd.f32 %v354, %v361
  %v365 = vmax.f32 %v363, 0.0
  %v366 = vmax.f32 %v364, 0.0
  %v367 = vadd.f32 %v365, %v179
  %v368 = vadd.f32 %v366, %v180
  %v369 = vpack.c.bf16 %v368, %v367
  %s370 = scalar_lea.vmem %s7, 64
  %v371 = vld [vmem:[%s370] sm:$0xf]
  %v372 = vld [vmem:[%s370 + $0x4] sm:$0xf]
  %v373 = vld [vmem:[%s370 + $0x8] sm:$0xf]
  %v374 = vld [vmem:[%s370 + $0xc] sm:$0xf]
  %v375 = vld [vmem:[%s370 + $0x10] sm:$0xf]
  %v376 = vld [vmem:[%s370 + $0x14] sm:$0xf]
  %v377 = vld [vmem:[%s370 + $0x18] sm:$0xf]
  %v378 = vld [vmem:[%s370 + $0x1c] sm:$0xf]
  %v379 = vld [vmem:[%s370 + $0x20] sm:$0xf]
  %v380 = vld [vmem:[%s370 + $0x24] sm:$0xf]
  %v381 = vld [vmem:[%s370 + $0x28] sm:$0xf]
  %v382 = vld [vmem:[%s370 + $0x2c] sm:$0xf]
  %v383 = vld [vmem:[%s370 + $0x30] sm:$0xf]
  %v384 = vld [vmem:[%s370 + $0x34] sm:$0xf]
  %v385 = vld [vmem:[%s370 + $0x38] sm:$0xf]
  %v386 = vld [vmem:[%s370 + $0x3c] sm:$0xf]
  %v403 = vunpack.c.l.b16 %v371
  %v404 = vunpack.c.l.b16 %v372
  %v405 = vunpack.c.l.b16 %v373
  %v406 = vunpack.c.l.b16 %v374
  %v407 = vunpack.c.l.b16 %v375
  %v408 = vunpack.c.l.b16 %v376
  %v409 = vunpack.c.l.b16 %v377
  %v410 = vunpack.c.l.b16 %v378
  %v411 = vunpack.c.l.b16 %v379
  %v412 = vunpack.c.l.b16 %v380
  %v413 = vunpack.c.l.b16 %v381
  %v414 = vunpack.c.l.b16 %v382
  %v415 = vunpack.c.l.b16 %v383
  %v416 = vunpack.c.l.b16 %v384
  %v417 = vunpack.c.l.b16 %v385
  %v418 = vunpack.c.l.b16 %v386
  %v419 = vpack.c.b16 %v404, %v403
  %v420 = vpack.c.b16 %v406, %v405
  %v421 = vpack.c.b16 %v408, %v407
  %v422 = vpack.c.b16 %v410, %v409
  %v423 = vpack.c.b16 %v412, %v411
  %v424 = vpack.c.b16 %v414, %v413
  %v425 = vpack.c.b16 %v416, %v415
  %v426 = vpack.c.b16 %v418, %v417
  %435 = vmatprep.subr.bf16.mxu0 0
  %436 = vmatpush1.bf16.msra.mxu0 %v426
  %437 = vmatprep.subr.bf16.mxu0 0
  %438 = vmatpush1.bf16.msra.mxu0 %v425
  %439 = vmatprep.subr.bf16.mxu0 0
  %440 = vmatpush1.bf16.msra.mxu0 %v424
  %441 = vmatprep.subr.bf16.mxu0 0
  %442 = vmatpush1.bf16.msra.mxu0 %v423
  %443 = vmatprep.subr.bf16.mxu0 0
  %444 = vmatpush1.bf16.msra.mxu0 %v422
  %445 = vmatprep.subr.bf16.mxu0 0
  %446 = vmatpush1.bf16.msra.mxu0 %v421
  %447 = vmatprep.subr.bf16.mxu0 0
  %448 = vmatpush1.bf16.msra.mxu0 %v420
  %449 = vmatprep.subr.bf16.mxu0 0
  %450 = vmatpush1.bf16.msra.mxu0 %v419
  %451 = vmatprep.subr.bf16.mxu0 0
  %452 = vmatpush2.bf16.msra.mxu0 0
  %453 = vmatprep.subr.bf16.mxu0 0
  %454 = vmatpush2.bf16.msra.mxu0 0
  %455 = vmatprep.subr.bf16.mxu0 0
  %456 = vmatpush2.bf16.msra.mxu0 0
  %457 = vmatprep.subr.bf16.mxu0 0
  %458 = vmatpush2.bf16.msra.mxu0 0
  %459 = vmatprep.subr.bf16.mxu0 0
  %460 = vmatpush2.bf16.msra.mxu0 0
  %461 = vmatprep.subr.bf16.mxu0 0
  %462 = vmatpush2.bf16.msra.mxu0 0
  %463 = vmatprep.subr.bf16.mxu0 0
  %464 = vmatpush2.bf16.msra.mxu0 0
  %465 = vmatprep.subr.bf16.mxu0 0
  %466 = vmatpush2.bf16.msra.mxu0 0
  %467 = vmatprep.mubr.bf16.mxu0 0
  %468 = vmatmul.mubr.bf16.gmra.mxu0 %v369
  %v469 = vpop.f32.mrf.mxu0
  %v470 = vadd.f32 0.0, %v469
  %v471 = vpop.f32.mrf.mxu0
  %v472 = vpop.f32.mrf.mxu0
  %v473 = vadd.f32 0.0, %v472
  %v474 = vpop.f32.mrf.mxu0
  %475 = vdwg.mxu0
  %v476 = vpack.c.bf16 %v473, %v470
  %s477 = scalar_lea.vmem %s8, 1
  %v478 = vld [vmem:[%s477] sm:$0x1]
  %v480 = vlaneseq
  %v481 = vshrl.u32 %v480, 7
  %v482 = vsub.s32 0, %v481
  %v483 = vrot.slane %v478, %v482
  %485 = vmatprep.subr.bf16.mxu0 0
  %486 = vmatpush1.bf16.msra.mxu0 0
  %487 = vmatprep.subr.bf16.mxu0 0
  %488 = vmatpush1.bf16.msra.mxu0 0
  %489 = vmatprep.subr.bf16.mxu0 0
  %490 = vmatpush1.bf16.msra.mxu0 0
  %491 = vmatprep.subr.bf16.mxu0 0
  %492 = vmatpush1.bf16.msra.mxu0 0
  %493 = vmatprep.subr.bf16.mxu0 0
  %494 = vmatpush1.bf16.msra.mxu0 0
  %495 = vmatprep.subr.bf16.mxu0 0
  %496 = vmatpush1.bf16.msra.mxu0 0
  %497 = vmatprep.subr.bf16.mxu0 0
  %498 = vmatpush1.bf16.msra.mxu0 0
  %499 = vmatprep.subr.bf16.mxu0 0
  %500 = vmatpush1.bf16.msra.mxu0 %v476
  %501 = vmatprep.subr.bf16.mxu0 0
  %502 = vmatpush2.bf16.msra.mxu0 0
  %503 = vmatprep.subr.bf16.mxu0 0
  %504 = vmatpush2.bf16.msra.mxu0 0
  %505 = vmatprep.subr.bf16.mxu0 0
  %506 = vmatpush2.bf16.msra.mxu0 0
  %507 = vmatprep.subr.bf16.mxu0 0
  %508 = vmatpush2.bf16.msra.mxu0 0
  %509 = vmatprep.subr.bf16.mxu0 0
  %510 = vmatpush2.bf16.msra.mxu0 0
  %511 = vmatprep.subr.bf16.mxu0 0
  %512 = vmatpush2.bf16.msra.mxu0 0
  %513 = vmatprep.subr.bf16.mxu0 0
  %514 = vmatpush2.bf16.msra.mxu0 0
  %515 = vmatprep.subr.bf16.mxu0 0
  %516 = vmatpush2.bf16.msra.mxu0 0
  %517 = vmatprep.mubr.bf16.mxu0 0
  %518 = vmatmul.mubr.bf16.gmra.mxu0 %v302
  %v519 = vpop.f32.mrf.mxu0
  %v520 = vadd.f32 %v483, %v519
  %v521 = vpop.f32.mrf.mxu0
  %v522 = vpop.f32.mrf.mxu0
  %v523 = vadd.f32 %v483, %v522
  %v524 = vpop.f32.mrf.mxu0
  %525 = vdwg.mxu0
  %s526 = scalar_lea.vmem %s5, 2
  %v527 = vld [vmem:[%s526] sm:$0x1]
  %v529 = vlaneseq
  %v530 = vshrl.u32 %v529, 7
  %v531 = vsub.s32 0, %v530
  %v532 = vrot.slane %v527, %v531
  %v534 = vmul.f32 %v520, %v532
  %v535 = vmul.f32 %v523, %v532
  %s536 = scalar_lea.vmem %s6, 2
  %v537 = vld [vmem:[%s536] sm:$0x1]
  %v539 = vlaneseq
  %v540 = vshrl.u32 %v539, 7
  %v541 = vsub.s32 0, %v540
  %v542 = vrot.slane %v537, %v541
  %v544 = vadd.f32 %v534, %v542
  %v545 = vadd.f32 %v535, %v542
  %v546 = vmax.f32 %v544, 0.0
  %v547 = vmax.f32 %v545, 0.0
  %v548 = vadd.f32 %v546, %v179
  %v549 = vadd.f32 %v547, %v180
  %v550 = vpack.c.bf16 %v549, %v548
  %s551 = scalar_lea.vmem %s7, 128
  %v552 = vld [vmem:[%s551] sm:$0xf]
  %v553 = vld [vmem:[%s551 + $0x4] sm:$0xf]
  %v554 = vld [vmem:[%s551 + $0x8] sm:$0xf]
  %v555 = vld [vmem:[%s551 + $0xc] sm:$0xf]
  %v556 = vld [vmem:[%s551 + $0x10] sm:$0xf]
  %v557 = vld [vmem:[%s551 + $0x14] sm:$0xf]
  %v558 = vld [vmem:[%s551 + $0x18] sm:$0xf]
  %v559 = vld [vmem:[%s551 + $0x1c] sm:$0xf]
  %v560 = vld [vmem:[%s551 + $0x20] sm:$0xf]
  %v561 = vld [vmem:[%s551 + $0x24] sm:$0xf]
  %v562 = vld [vmem:[%s551 + $0x28] sm:$0xf]
  %v563 = vld [vmem:[%s551 + $0x2c] sm:$0xf]
  %v564 = vld [vmem:[%s551 + $0x30] sm:$0xf]
  %v565 = vld [vmem:[%s551 + $0x34] sm:$0xf]
  %v566 = vld [vmem:[%s551 + $0x38] sm:$0xf]
  %v567 = vld [vmem:[%s551 + $0x3c] sm:$0xf]
  %v584 = vunpack.c.l.b16 %v552
  %v585 = vunpack.c.l.b16 %v553
  %v586 = vunpack.c.l.b16 %v554
  %v587 = vunpack.c.l.b16 %v555
  %v588 = vunpack.c.l.b16 %v556
  %v589 = vunpack.c.l.b16 %v557
  %v590 = vunpack.c.l.b16 %v558
  %v591 = vunpack.c.l.b16 %v559
  %v592 = vunpack.c.l.b16 %v560
  %v593 = vunpack.c.l.b16 %v561
  %v594 = vunpack.c.l.b16 %v562
  %v595 = vunpack.c.l.b16 %v563
  %v596 = vunpack.c.l.b16 %v564
  %v597 = vunpack.c.l.b16 %v565
  %v598 = vunpack.c.l.b16 %v566
  %v599 = vunpack.c.l.b16 %v567
  %v600 = vpack.c.b16 %v585, %v584
  %v601 = vpack.c.b16 %v587, %v586
  %v602 = vpack.c.b16 %v589, %v588
  %v603 = vpack.c.b16 %v591, %v590
  %v604 = vpack.c.b16 %v593, %v592
  %v605 = vpack.c.b16 %v595, %v594
  %v606 = vpack.c.b16 %v597, %v596
  %v607 = vpack.c.b16 %v599, %v598
  %616 = vmatprep.subr.bf16.mxu0 0
  %617 = vmatpush1.bf16.msra.mxu0 %v607
  %618 = vmatprep.subr.bf16.mxu0 0
  %619 = vmatpush1.bf16.msra.mxu0 %v606
  %620 = vmatprep.subr.bf16.mxu0 0
  %621 = vmatpush1.bf16.msra.mxu0 %v605
  %622 = vmatprep.subr.bf16.mxu0 0
  %623 = vmatpush1.bf16.msra.mxu0 %v604
  %624 = vmatprep.subr.bf16.mxu0 0
  %625 = vmatpush1.bf16.msra.mxu0 %v603
  %626 = vmatprep.subr.bf16.mxu0 0
  %627 = vmatpush1.bf16.msra.mxu0 %v602
  %628 = vmatprep.subr.bf16.mxu0 0
  %629 = vmatpush1.bf16.msra.mxu0 %v601
  %630 = vmatprep.subr.bf16.mxu0 0
  %631 = vmatpush1.bf16.msra.mxu0 %v600
  %632 = vmatprep.subr.bf16.mxu0 0
  %633 = vmatpush2.bf16.msra.mxu0 0
  %634 = vmatprep.subr.bf16.mxu0 0
  %635 = vmatpush2.bf16.msra.mxu0 0
  %636 = vmatprep.subr.bf16.mxu0 0
  %637 = vmatpush2.bf16.msra.mxu0 0
  %638 = vmatprep.subr.bf16.mxu0 0
  %639 = vmatpush2.bf16.msra.mxu0 0
  %640 = vmatprep.subr.bf16.mxu0 0
  %641 = vmatpush2.bf16.msra.mxu0 0
  %642 = vmatprep.subr.bf16.mxu0 0
  %643 = vmatpush2.bf16.msra.mxu0 0
  %644 = vmatprep.subr.bf16.mxu0 0
  %645 = vmatpush2.bf16.msra.mxu0 0
  %646 = vmatprep.subr.bf16.mxu0 0
  %647 = vmatpush2.bf16.msra.mxu0 0
  %648 = vmatprep.mubr.bf16.mxu0 0
  %649 = vmatmul.mubr.bf16.gmra.mxu0 %v550
  %v650 = vpop.f32.mrf.mxu0
  %v651 = vadd.f32 0.0, %v650
  %v652 = vpop.f32.mrf.mxu0
  %v653 = vpop.f32.mrf.mxu0
  %v654 = vadd.f32 0.0, %v653
  %v655 = vpop.f32.mrf.mxu0
  %656 = vdwg.mxu0
  %v657 = vpack.c.bf16 %v654, %v651
  %s658 = scalar_lea.vmem %s8, 2
  %v659 = vld [vmem:[%s658] sm:$0x1]
  %v661 = vlaneseq
  %v662 = vshrl.u32 %v661, 7
  %v663 = vsub.s32 0, %v662
  %v664 = vrot.slane %v659, %v663
  %666 = vmatprep.subr.bf16.mxu0 0
  %667 = vmatpush1.bf16.msra.mxu0 0
  %668 = vmatprep.subr.bf16.mxu0 0
  %669 = vmatpush1.bf16.msra.mxu0 0
  %670 = vmatprep.subr.bf16.mxu0 0
  %671 = vmatpush1.bf16.msra.mxu0 0
  %672 = vmatprep.subr.bf16.mxu0 0
  %673 = vmatpush1.bf16.msra.mxu0 0
  %674 = vmatprep.subr.bf16.mxu0 0
  %675 = vmatpush1.bf16.msra.mxu0 0
  %676 = vmatprep.subr.bf16.mxu0 0
  %677 = vmatpush1.bf16.msra.mxu0 0
  %678 = vmatprep.subr.bf16.mxu0 0
  %679 = vmatpush1.bf16.msra.mxu0 0
  %680 = vmatprep.subr.bf16.mxu0 0
  %681 = vmatpush1.bf16.msra.mxu0 %v657
  %682 = vmatprep.subr.bf16.mxu0 0
  %683 = vmatpush2.bf16.msra.mxu0 0
  %684 = vmatprep.subr.bf16.mxu0 0
  %685 = vmatpush2.bf16.msra.mxu0 0
  %686 = vmatprep.subr.bf16.mxu0 0
  %687 = vmatpush2.bf16.msra.mxu0 0
  %688 = vmatprep.subr.bf16.mxu0 0
  %689 = vmatpush2.bf16.msra.mxu0 0
  %690 = vmatprep.subr.bf16.mxu0 0
  %691 = vmatpush2.bf16.msra.mxu0 0
  %692 = vmatprep.subr.bf16.mxu0 0
  %693 = vmatpush2.bf16.msra.mxu0 0
  %694 = vmatprep.subr.bf16.mxu0 0
  %695 = vmatpush2.bf16.msra.mxu0 0
  %696 = vmatprep.subr.bf16.mxu0 0
  %697 = vmatpush2.bf16.msra.mxu0 0
  %698 = vmatprep.mubr.bf16.mxu0 0
  %699 = vmatmul.mubr.bf16.gmra.mxu0 %v302
  %v700 = vpop.f32.mrf.mxu0
  %v701 = vadd.f32 %v664, %v700
  %v702 = vpop.f32.mrf.mxu0
  %v703 = vpop.f32.mrf.mxu0
  %v704 = vadd.f32 %v664, %v703
  %v705 = vpop.f32.mrf.mxu0
  %706 = vdwg.mxu0
  %s707 = scalar_lea.vmem %s5, 3
  %v708 = vld [vmem:[%s707] sm:$0x1]
  %v710 = vlaneseq
  %v711 = vshrl.u32 %v710, 7
  %v712 = vsub.s32 0, %v711
  %v713 = vrot.slane %v708, %v712
  %v715 = vmul.f32 %v701, %v713
  %v716 = vmul.f32 %v704, %v713
  %s717 = scalar_lea.vmem %s6, 3
  %v718 = vld [vmem:[%s717] sm:$0x1]
  %v720 = vlaneseq
  %v721 = vshrl.u32 %v720, 7
  %v722 = vsub.s32 0, %v721
  %v723 = vrot.slane %v718, %v722
  %v725 = vadd.f32 %v715, %v723
  %v726 = vadd.f32 %v716, %v723
  %v727 = vmax.f32 %v725, 0.0
  %v728 = vmax.f32 %v726, 0.0
  %v729 = vadd.f32 %v727, %v179
  %v730 = vadd.f32 %v728, %v180
  %v731 = vld [vmem:[%s2] sm:$0xf]
  %v732 = vld [vmem:[%s2 + $0x4] sm:$0xf]
  %v733 = vunpack.c.l.bf16 %v731
  %v734 = vunpack.c.l.bf16 %v732
  %v735 = vmul.f32 %v729, 0.5
  %v736 = vmul.f32 %v730, 0.5
  %v737 = vmul.f32 %v733, 0.5
  %v738 = vmul.f32 %v734, 0.5
  %v739 = vadd.f32 %v735, %v737
  %v740 = vadd.f32 %v736, %v738
  %v741 = vpack.c.bf16 %v740, %v739
  %v742 = vld [vmem:[%s9] sm:$0xf]
  %v743 = vld [vmem:[%s9 + $0x4] sm:$0xf]
  %v744 = vld [vmem:[%s9 + $0x8] sm:$0xf]
  %v745 = vld [vmem:[%s9 + $0xc] sm:$0xf]
  %v746 = vld [vmem:[%s9 + $0x10] sm:$0xf]
  %v747 = vld [vmem:[%s9 + $0x14] sm:$0xf]
  %v748 = vld [vmem:[%s9 + $0x18] sm:$0xf]
  %v749 = vld [vmem:[%s9 + $0x1c] sm:$0xf]
  %v750 = vld [vmem:[%s9 + $0x20] sm:$0xf]
  %v751 = vld [vmem:[%s9 + $0x24] sm:$0xf]
  %v752 = vld [vmem:[%s9 + $0x28] sm:$0xf]
  %v753 = vld [vmem:[%s9 + $0x2c] sm:$0xf]
  %v754 = vld [vmem:[%s9 + $0x30] sm:$0xf]
  %v755 = vld [vmem:[%s9 + $0x34] sm:$0xf]
  %v756 = vld [vmem:[%s9 + $0x38] sm:$0xf]
  %v757 = vld [vmem:[%s9 + $0x3c] sm:$0xf]
  %v758 = vld [vmem:[%s10] sm:$0x1]
  %v760 = vlaneseq
  %v761 = vshrl.u32 %v760, 7
  %v762 = vsub.s32 0, %v761
  %v763 = vrot.slane %v758, %v762
  %v781 = vunpack.c.l.b16 %v742
  %v782 = vunpack.c.l.b16 %v743
  %v783 = vunpack.c.l.b16 %v744
  %v784 = vunpack.c.l.b16 %v745
  %v785 = vunpack.c.l.b16 %v746
  %v786 = vunpack.c.l.b16 %v747
  %v787 = vunpack.c.l.b16 %v748
  %v788 = vunpack.c.l.b16 %v749
  %v789 = vunpack.c.l.b16 %v750
  %v790 = vunpack.c.l.b16 %v751
  %v791 = vunpack.c.l.b16 %v752
  %v792 = vunpack.c.l.b16 %v753
  %v793 = vunpack.c.l.b16 %v754
  %v794 = vunpack.c.l.b16 %v755
  %v795 = vunpack.c.l.b16 %v756
  %v796 = vunpack.c.l.b16 %v757
  %v797 = vpack.c.b16 %v782, %v781
  %v798 = vpack.c.b16 %v784, %v783
  %v799 = vpack.c.b16 %v786, %v785
  %v800 = vpack.c.b16 %v788, %v787
  %v801 = vpack.c.b16 %v790, %v789
  %v802 = vpack.c.b16 %v792, %v791
  %v803 = vpack.c.b16 %v794, %v793
  %v804 = vpack.c.b16 %v796, %v795
  %813 = vmatprep.subr.bf16.mxu0 0
  %814 = vmatpush1.bf16.msra.mxu0 %v804
  %815 = vmatprep.subr.bf16.mxu0 0
  %816 = vmatpush1.bf16.msra.mxu0 %v803
  %817 = vmatprep.subr.bf16.mxu0 0
  %818 = vmatpush1.bf16.msra.mxu0 %v802
  %819 = vmatprep.subr.bf16.mxu0 0
  %820 = vmatpush1.bf16.msra.mxu0 %v801
  %821 = vmatprep.subr.bf16.mxu0 0
  %822 = vmatpush1.bf16.msra.mxu0 %v800
  %823 = vmatprep.subr.bf16.mxu0 0
  %824 = vmatpush1.bf16.msra.mxu0 %v799
  %825 = vmatprep.subr.bf16.mxu0 0
  %826 = vmatpush1.bf16.msra.mxu0 %v798
  %827 = vmatprep.subr.bf16.mxu0 0
  %828 = vmatpush1.bf16.msra.mxu0 %v797
  %829 = vmatprep.subr.bf16.mxu0 0
  %830 = vmatpush2.bf16.msra.mxu0 0
  %831 = vmatprep.subr.bf16.mxu0 0
  %832 = vmatpush2.bf16.msra.mxu0 0
  %833 = vmatprep.subr.bf16.mxu0 0
  %834 = vmatpush2.bf16.msra.mxu0 0
  %835 = vmatprep.subr.bf16.mxu0 0
  %836 = vmatpush2.bf16.msra.mxu0 0
  %837 = vmatprep.subr.bf16.mxu0 0
  %838 = vmatpush2.bf16.msra.mxu0 0
  %839 = vmatprep.subr.bf16.mxu0 0
  %840 = vmatpush2.bf16.msra.mxu0 0
  %841 = vmatprep.subr.bf16.mxu0 0
  %842 = vmatpush2.bf16.msra.mxu0 0
  %843 = vmatprep.subr.bf16.mxu0 0
  %844 = vmatpush2.bf16.msra.mxu0 0
  %845 = vmatprep.mubr.bf16.mxu0 0
  %846 = vmatmul.mubr.bf16.gmra.mxu0 %v741
  %v847 = vpop.f32.mrf.mxu0
  %v848 = vadd.f32 %v763, %v847
  %v849 = vpop.f32.mrf.mxu0
  %v850 = vpop.f32.mrf.mxu0
  %v851 = vadd.f32 %v763, %v850
  %v852 = vpop.f32.mrf.mxu0
  %853 = vdwg.mxu0
  %854 = vst [vmem:[%s11] sm:$0xff] %v848
  %855 = vst [vmem:[%s11 + $0x8] sm:$0xff] %v851
  // Predicated region
  $region46: #{sgformer_forward.5} parent=0 // pred_check
    _
  $region47: #{sgformer_forward.5} parent=0 // pred_check_branch
    %857 = sbr.rel (0) target = $region49
  $region48: #{sgformer_forward.5} parent=0 // pred_region
    _
  $region49: #{sgformer_forward.5} parent=0 // pred_fallthru
    _
  // Predicated region
  $region50: #{sgformer_forward.5} parent=0 // pred_check
    _
  $region51: #{sgformer_forward.5} parent=0 // pred_check_branch
    %859 = sbr.rel (0) target = $region53
  $region52: #{sgformer_forward.5} parent=0 // pred_region
    _
  $region53: #{sgformer_forward.5} parent=0 // pred_fallthru
    _

// kernel: sgformer_forward.4
$region0: #{sgformer_forward.4}
  #allocation0 [shape = 'u32[]', space=smem, size = 0x4, offset = 0x4, fixed_abs, tag = 'smem constant byte address 0x4 - core index']
  #allocation1 [shape = 'u32[144,128]{1,0:T(1,128)}', space=vmem, size = 0x12000, scoped, tag = 'internal scratch']
  %s0 = inlined_call_operand.vmem [shape: bf16[16,128], index: 0, kind: input, shape index: {}]
  %s1 = inlined_call_operand.vmem [shape: bf16[128,128], index: 1, kind: input, shape index: {}]
  %s2 = inlined_call_operand.vmem [shape: f32[1,128], index: 2, kind: input, shape index: {}]
  %s3 = inlined_call_operand.vmem [shape: f32[3,1,128], index: 3, kind: input, shape index: {}]
  %s4 = inlined_call_operand.vmem [shape: f32[3,1,128], index: 4, kind: input, shape index: {}]
  %s5 = inlined_call_operand.hbm [shape: bf16[2,128,384], index: 5, kind: input, shape index: {}]
  %s6 = inlined_call_operand.vmem [shape: bf16[16,128], index: 6, kind: output, shape index: {}]
  %s7 = sld [smem:[#allocation0]]
  $region38: #{sgformer_forward.4} parent=0
    _
  %s9 = ssub.s32 1, %s7
  %s10 = scalar_select 0, %s9, %s7
  $region1: #{sgformer_forward.4} parent=0
    #allocation2 [shape = 'u8[196608]{0}', space=vmem, size = 0x30000, scoped, tag = 'input window, operand 5, single buffered']
    #allocation3 [shape = 's32[1]{0}', space=sflag, size = 0x4, scoped, tag = 'scoped memory for sgformer_forward.4']
    %11 = vsyncpa [#allocation3], 0
    // Predicated region
    $region2: #{sgformer_forward.4} parent=1 // pred_check
      _
    $region3: #{sgformer_forward.4} parent=1 // pred_check_branch
      %13 = sbr.rel (0) target = $region5
    $region4: #{sgformer_forward.4} parent=1 // pred_region
      _
    $region5: #{sgformer_forward.4} parent=1 // pred_fallthru
      _
    // Predicated region
    $region6: #{sgformer_forward.4} parent=1 // pred_check
      _
    $region7: #{sgformer_forward.4} parent=1 // pred_check_branch
      %15 = sbr.rel (0) target = $region9
    $region8: #{sgformer_forward.4} parent=1 // pred_region
      _
    $region9: #{sgformer_forward.4} parent=1 // pred_fallthru
      _
    // Predicated region
    $region10: #{sgformer_forward.4} parent=1 // pred_check
      _
    $region11: #{sgformer_forward.4} parent=1 // pred_check_branch
      %17 = sbr.rel (0) target = $region13
    $region12: #{sgformer_forward.4} parent=1 // pred_region
      _
    $region13: #{sgformer_forward.4} parent=1 // pred_fallthru
      _
    // Predicated region
    $region14: #{sgformer_forward.4} parent=1 // pred_check
      _
    $region15: #{sgformer_forward.4} parent=1 // pred_check_branch
      %19 = sbr.rel (0) target = $region17
    $region16: #{sgformer_forward.4} parent=1 // pred_region
      _
    $region17: #{sgformer_forward.4} parent=1 // pred_fallthru
      _
    // Predicated region
    $region18: #{sgformer_forward.4} parent=1 // pred_check
      _
    $region19: #{sgformer_forward.4} parent=1 // pred_check_branch
      %21 = sbr.rel (0) target = $region21
    $region20: #{sgformer_forward.4} parent=1 // pred_region
      _
    $region21: #{sgformer_forward.4} parent=1 // pred_fallthru
      _
    // Predicated region
    $region22: #{sgformer_forward.4} parent=1 // pred_check
      _
    $region23: #{sgformer_forward.4} parent=1 // pred_check_branch
      %23 = sbr.rel (0) target = $region25
    $region24: #{sgformer_forward.4} parent=1 // pred_region
      %s25 = ssub.s32 6144, 6144
      %26 = vsyncadd [#allocation3], %s25
      %s27 = sshll.u32 [#allocation2], 4
      %s28 = int_to_ptr.vmem [resolvable:$true] %s27
      %33 = dma.hbm_to_vmem [thread:$0]  %s5, 6144, %s28, [#allocation3], 192, 192, 12
    $region25: #{sgformer_forward.4} parent=1 // pred_fallthru
      _
    // Predicated region
    $region26: #{sgformer_forward.4} parent=1 // pred_check
      _
    $region27: #{sgformer_forward.4} parent=1 // pred_check_branch
      %35 = sbr.rel (0) target = $region29
    $region28: #{sgformer_forward.4} parent=1 // pred_region
      %36 = dma.done [#allocation3], 6144
    $region29: #{sgformer_forward.4} parent=1 // pred_fallthru
      _
    %v38 = vlaneseq
    %v39 = vand.u32 %v38, 127
    %vm40 = vcmp.lt.s32.totalorder %v39, 32
    %v41 = vld [vmem:[%s0] sm:$0xf]
    %v42 = vld [vmem:[%s0 + $0x4] sm:$0xf]
    %v43 = vld [vmem:[%s1] sm:$0xf]
    %v44 = vld [vmem:[%s1 + $0x4] sm:$0xf]
    %v45 = vld [vmem:[%s1 + $0x8] sm:$0xf]
    %v46 = vld [vmem:[%s1 + $0xc] sm:$0xf]
    %v47 = vld [vmem:[%s1 + $0x10] sm:$0xf]
    %v48 = vld [vmem:[%s1 + $0x14] sm:$0xf]
    %v49 = vld [vmem:[%s1 + $0x18] sm:$0xf]
    %v50 = vld [vmem:[%s1 + $0x1c] sm:$0xf]
    %v51 = vld [vmem:[%s1 + $0x20] sm:$0xf]
    %v52 = vld [vmem:[%s1 + $0x24] sm:$0xf]
    %v53 = vld [vmem:[%s1 + $0x28] sm:$0xf]
    %v54 = vld [vmem:[%s1 + $0x2c] sm:$0xf]
    %v55 = vld [vmem:[%s1 + $0x30] sm:$0xf]
    %v56 = vld [vmem:[%s1 + $0x34] sm:$0xf]
    %v57 = vld [vmem:[%s1 + $0x38] sm:$0xf]
    %v58 = vld [vmem:[%s1 + $0x3c] sm:$0xf]
    %v59 = vld [vmem:[%s2] sm:$0x1]
    %v61 = vlaneseq
    %v62 = vshrl.u32 %v61, 7
    %v63 = vsub.s32 0, %v62
    %v64 = vrot.slane %v59, %v63
    %v68 = vunpack.c.l.b16 %v41
    %v69 = vunpack.c.l.b16 %v42
    %v70 = vpack.c.b16 %v69, %v68
    %v88 = vunpack.c.l.b16 %v43
    %v89 = vunpack.c.l.b16 %v44
    %v90 = vunpack.c.l.b16 %v45
    %v91 = vunpack.c.l.b16 %v46
    %v92 = vunpack.c.l.b16 %v47
    %v93 = vunpack.c.l.b16 %v48
    %v94 = vunpack.c.l.b16 %v49
    %v95 = vunpack.c.l.b16 %v50
    %v96 = vunpack.c.l.b16 %v51
    %v97 = vunpack.c.l.b16 %v52
    %v98 = vunpack.c.l.b16 %v53
    %v99 = vunpack.c.l.b16 %v54
    %v100 = vunpack.c.l.b16 %v55
    %v101 = vunpack.c.l.b16 %v56
    %v102 = vunpack.c.l.b16 %v57
    %v103 = vunpack.c.l.b16 %v58
    %v104 = vpack.c.b16 %v89, %v88
    %v105 = vpack.c.b16 %v91, %v90
    %v106 = vpack.c.b16 %v93, %v92
    %v107 = vpack.c.b16 %v95, %v94
    %v108 = vpack.c.b16 %v97, %v96
    %v109 = vpack.c.b16 %v99, %v98
    %v110 = vpack.c.b16 %v101, %v100
    %v111 = vpack.c.b16 %v103, %v102
    %120 = vmatprep.subr.bf16.mxu0 0
    %121 = vmatpush1.bf16.msra.mxu0 %v111
    %122 = vmatprep.subr.bf16.mxu0 0
    %123 = vmatpush1.bf16.msra.mxu0 %v110
    %124 = vmatprep.subr.bf16.mxu0 0
    %125 = vmatpush1.bf16.msra.mxu0 %v109
    %126 = vmatprep.subr.bf16.mxu0 0
    %127 = vmatpush1.bf16.msra.mxu0 %v108
    %128 = vmatprep.subr.bf16.mxu0 0
    %129 = vmatpush1.bf16.msra.mxu0 %v107
    %130 = vmatprep.subr.bf16.mxu0 0
    %131 = vmatpush1.bf16.msra.mxu0 %v106
    %132 = vmatprep.subr.bf16.mxu0 0
    %133 = vmatpush1.bf16.msra.mxu0 %v105
    %134 = vmatprep.subr.bf16.mxu0 0
    %135 = vmatpush1.bf16.msra.mxu0 %v104
    %136 = vmatprep.subr.bf16.mxu0 0
    %137 = vmatpush2.bf16.msra.mxu0 0
    %138 = vmatprep.subr.bf16.mxu0 0
    %139 = vmatpush2.bf16.msra.mxu0 0
    %140 = vmatprep.subr.bf16.mxu0 0
    %141 = vmatpush2.bf16.msra.mxu0 0
    %142 = vmatprep.subr.bf16.mxu0 0
    %143 = vmatpush2.bf16.msra.mxu0 0
    %144 = vmatprep.subr.bf16.mxu0 0
    %145 = vmatpush2.bf16.msra.mxu0 0
    %146 = vmatprep.subr.bf16.mxu0 0
    %147 = vmatpush2.bf16.msra.mxu0 0
    %148 = vmatprep.subr.bf16.mxu0 0
    %149 = vmatpush2.bf16.msra.mxu0 0
    %150 = vmatprep.subr.bf16.mxu0 0
    %151 = vmatpush2.bf16.msra.mxu0 0
    %152 = vmatprep.mubr.bf16.mxu0 0
    %153 = vmatmul.mubr.bf16.gmra.mxu0 %v70
    %v154 = vpop.f32.mrf.mxu0
    %v155 = vadd.f32 %v64, %v154
    %v156 = vpop.f32.mrf.mxu0
    %v157 = vpop.f32.mrf.mxu0
    %v158 = vadd.f32 %v64, %v157
    %v159 = vpop.f32.mrf.mxu0
    %160 = vdwg.mxu0
    %v161 = vld [vmem:[%s3] sm:$0x1]
    %v162 = vld [vmem:[%s4] sm:$0x1]
    %163 = vadd.xlane.f32.xlu0 %v155
    %v164 = vpop.xlane.xlu0 %163
    %165 = vadd.xlane.f32.xlu0 %v158
    %v166 = vpop.xlane.xlu0 %165
    %v167 = vmul.f32 %v164, 0.03125
    %v168 = vmul.f32 %v166, 0.03125
    %v169 = vsub.f32 %v155, %v167
    %v170 = vsub.f32 %v158, %v168
    %v171 = vsel %vm40, 1, 0
    %vm172 = vcmp.eq.s32.totalorder %v171, 1
    %v173 = vsel %vm172, %v169, 0.0
    %v174 = vsel %vm172, %v170, 0.0
    %v175 = vmul.f32 %v173, %v173
    %v176 = vmul.f32 %v174, %v174
    %177 = vadd.xlane.f32.xlu0 %v175
    %v178 = vpop.xlane.xlu0 %177
    %179 = vadd.xlane.f32.xlu0 %v176
    %v180 = vpop.xlane.xlu0 %179
    %v181 = vmul.f32 %v178, 0.03125
    %v182 = vmul.f32 %v180, 0.03125
    %v183 = vadd.f32 %v181, 1e-05
    %v184 = vadd.f32 %v182, 1e-05
    %v185 = vrsqrt.pop %v183
    %v186 = vrsqrt.pop %v184
    %v187 = vmul.f32 %v173, %v185
    %v188 = vmul.f32 %v174, %v186
    %v190 = vlaneseq
    %v191 = vshrl.u32 %v190, 7
    %v192 = vsub.s32 0, %v191
    %v193 = vrot.slane %v161, %v192
    %v195 = vmul.f32 %v187, %v193
    %v196 = vmul.f32 %v188, %v193
    %v198 = vlaneseq
    %v199 = vshrl.u32 %v198, 7
    %v200 = vsub.s32 0, %v199
    %v201 = vrot.slane %v162, %v200
    %v203 = vadd.f32 %v195, %v201
    %v204 = vadd.f32 %v196, %v201
    %v205 = vmax.f32 %v203, 0.0
    %v206 = vmax.f32 %v204, 0.0
    %v207 = vpack.c.bf16 %v206, %v205
    %v208 = vld [vmem:[#allocation2] sm:$0xff]
    %v209 = vld [vmem:[#allocation2 + $0x8] sm:$0xf]
    %v210 = vld [vmem:[#allocation2 + $0xc] sm:$0xff]
    %v211 = vld [vmem:[#allocation2 + $0x14] sm:$0xf]
    %v212 = vld [vmem:[#allocation2 + $0x18] sm:$0xff]
    %v213 = vld [vmem:[#allocation2 + $0x20] sm:$0xf]
    %v214 = vld [vmem:[#allocation2 + $0x24] sm:$0xff]
    %v215 = vld [vmem:[#allocation2 + $0x2c] sm:$0xf]
    %v216 = vld [vmem:[#allocation2 + $0x30] sm:$0xff]
    %v217 = vld [vmem:[#allocation2 + $0x38] sm:$0xf]
    %v218 = vld [vmem:[#allocation2 + $0x3c] sm:$0xff]
    %v219 = vld [vmem:[#allocation2 + $0x44] sm:$0xf]
    %v220 = vld [vmem:[#allocation2 + $0x48] sm:$0xff]
    %v221 = vld [vmem:[#allocation2 + $0x50] sm:$0xf]
    %v222 = vld [vmem:[#allocation2 + $0x54] sm:$0xff]
    %v223 = vld [vmem:[#allocation2 + $0x5c] sm:$0xf]
    %v224 = vld [vmem:[#allocation2 + $0x60] sm:$0xff]
    %v225 = vld [vmem:[#allocation2 + $0x68] sm:$0xf]
    %v226 = vld [vmem:[#allocation2 + $0x6c] sm:$0xff]
    %v227 = vld [vmem:[#allocation2 + $0x74] sm:$0xf]
    %v228 = vld [vmem:[#allocation2 + $0x78] sm:$0xff]
    %v229 = vld [vmem:[#allocation2 + $0x80] sm:$0xf]
    %v230 = vld [vmem:[#allocation2 + $0x84] sm:$0xff]
    %v231 = vld [vmem:[#allocation2 + $0x8c] sm:$0xf]
    %v232 = vld [vmem:[#allocation2 + $0x90] sm:$0xff]
    %v233 = vld [vmem:[#allocation2 + $0x98] sm:$0xf]
    %v234 = vld [vmem:[#allocation2 + $0x9c] sm:$0xff]
    %v235 = vld [vmem:[#allocation2 + $0xa4] sm:$0xf]
    %v236 = vld [vmem:[#allocation2 + $0xa8] sm:$0xff]
    %v237 = vld [vmem:[#allocation2 + $0xb0] sm:$0xf]
    %v238 = vld [vmem:[#allocation2 + $0xb4] sm:$0xff]
    %v239 = vld [vmem:[#allocation2 + $0xbc] sm:$0xf]
    %v272 = vunpack.c.l.b16 %v208
    %v273 = vunpack.c.h.b16 %v208
    %v274 = vunpack.c.l.b16 %v209
    %v275 = vunpack.c.l.b16 %v210
    %v276 = vunpack.c.h.b16 %v210
    %v277 = vunpack.c.l.b16 %v211
    %v278 = vunpack.c.l.b16 %v212
    %v279 = vunpack.c.h.b16 %v212
    %v280 = vunpack.c.l.b16 %v213
    %v281 = vunpack.c.l.b16 %v214
    %v282 = vunpack.c.h.b16 %v214
    %v283 = vunpack.c.l.b16 %v215
    %v284 = vunpack.c.l.b16 %v216
    %v285 = vunpack.c.h.b16 %v216
    %v286 = vunpack.c.l.b16 %v217
    %v287 = vunpack.c.l.b16 %v218
    %v288 = vunpack.c.h.b16 %v218
    %v289 = vunpack.c.l.b16 %v219
    %v290 = vunpack.c.l.b16 %v220
    %v291 = vunpack.c.h.b16 %v220
    %v292 = vunpack.c.l.b16 %v221
    %v293 = vunpack.c.l.b16 %v222
    %v294 = vunpack.c.h.b16 %v222
    %v295 = vunpack.c.l.b16 %v223
    %v296 = vunpack.c.l.b16 %v224
    %v297 = vunpack.c.h.b16 %v224
    %v298 = vunpack.c.l.b16 %v225
    %v299 = vunpack.c.l.b16 %v226
    %v300 = vunpack.c.h.b16 %v226
    %v301 = vunpack.c.l.b16 %v227
    %v302 = vunpack.c.l.b16 %v228
    %v303 = vunpack.c.h.b16 %v228
    %v304 = vunpack.c.l.b16 %v229
    %v305 = vunpack.c.l.b16 %v230
    %v306 = vunpack.c.h.b16 %v230
    %v307 = vunpack.c.l.b16 %v231
    %v308 = vunpack.c.l.b16 %v232
    %v309 = vunpack.c.h.b16 %v232
    %v310 = vunpack.c.l.b16 %v233
    %v311 = vunpack.c.l.b16 %v234
    %v312 = vunpack.c.h.b16 %v234
    %v313 = vunpack.c.l.b16 %v235
    %v314 = vunpack.c.l.b16 %v236
    %v315 = vunpack.c.h.b16 %v236
    %v316 = vunpack.c.l.b16 %v237
    %v317 = vunpack.c.l.b16 %v238
    %v318 = vunpack.c.h.b16 %v238
    %v319 = vunpack.c.l.b16 %v239
    %v320 = vpack.c.b16 %v275, %v272
    %v321 = vpack.c.b16 %v276, %v273
    %v322 = vpack.c.b16 %v277, %v274
    %v323 = vpack.c.b16 %v281, %v278
    %v324 = vpack.c.b16 %v282, %v279
    %v325 = vpack.c.b16 %v283, %v280
    %v326 = vpack.c.b16 %v287, %v284
    %v327 = vpack.c.b16 %v288, %v285
    %v328 = vpack.c.b16 %v289, %v286
    %v329 = vpack.c.b16 %v293, %v290
    %v330 = vpack.c.b16 %v294, %v291
    %v331 = vpack.c.b16 %v295, %v292
    %v332 = vpack.c.b16 %v299, %v296
    %v333 = vpack.c.b16 %v300, %v297
    %v334 = vpack.c.b16 %v301, %v298
    %v335 = vpack.c.b16 %v305, %v302
    %v336 = vpack.c.b16 %v306, %v303
    %v337 = vpack.c.b16 %v307, %v304
    %v338 = vpack.c.b16 %v311, %v308
    %v339 = vpack.c.b16 %v312, %v309
    %v340 = vpack.c.b16 %v313, %v310
    %v341 = vpack.c.b16 %v317, %v314
    %v342 = vpack.c.b16 %v318, %v315
    %v343 = vpack.c.b16 %v319, %v316
    %368 = vmatprep.subr.bf16.mxu0 %v342
    %369 = vmatpush1.bf16.msra.mxu0 %v341
    %370 = vmatprep.subr.bf16.mxu0 %v339
    %371 = vmatpush1.bf16.msra.mxu0 %v338
    %372 = vmatprep.subr.bf16.mxu0 %v336
    %373 = vmatpush1.bf16.msra.mxu0 %v335
    %374 = vmatprep.subr.bf16.mxu0 %v333
    %375 = vmatpush1.bf16.msra.mxu0 %v332
    %376 = vmatprep.subr.bf16.mxu0 %v330
    %377 = vmatpush1.bf16.msra.mxu0 %v329
    %378 = vmatprep.subr.bf16.mxu0 %v327
    %379 = vmatpush1.bf16.msra.mxu0 %v326
    %380 = vmatprep.subr.bf16.mxu0 %v324
    %381 = vmatpush1.bf16.msra.mxu0 %v323
    %382 = vmatprep.subr.bf16.mxu0 %v321
    %383 = vmatpush1.bf16.msra.mxu0 %v320
    %384 = vmatprep.subr.bf16.mxu0 0
    %385 = vmatpush2.bf16.msra.mxu0 0
    %386 = vmatprep.subr.bf16.mxu0 0
    %387 = vmatpush2.bf16.msra.mxu0 0
    %388 = vmatprep.subr.bf16.mxu0 0
    %389 = vmatpush2.bf16.msra.mxu0 0
    %390 = vmatprep.subr.bf16.mxu0 0
    %391 = vmatpush2.bf16.msra.mxu0 0
    %392 = vmatprep.subr.bf16.mxu0 0
    %393 = vmatpush2.bf16.msra.mxu0 0
    %394 = vmatprep.subr.bf16.mxu0 0
    %395 = vmatpush2.bf16.msra.mxu0 0
    %396 = vmatprep.subr.bf16.mxu0 0
    %397 = vmatpush2.bf16.msra.mxu0 0
    %398 = vmatprep.subr.bf16.mxu0 0
    %399 = vmatpush2.bf16.msra.mxu0 0
    %400 = vmatprep.mubr.bf16.mxu0 0
    %401 = vmatmul.mubr.bf16.gmra.mxu0 %v207
    %v402 = vpop.f32.mrf.mxu0
    %v403 = vadd.f32 0.0, %v402
    %v404 = vpop.f32.mrf.mxu0
    %v405 = vadd.f32 0.0, %v404
    %v406 = vpop.f32.mrf.mxu0
    %v407 = vadd.f32 0.0, %v406
    %v408 = vpop.f32.mrf.mxu0
    %v409 = vadd.f32 0.0, %v408
    %410 = vdwg.mxu0
    %411 = vmatprep.subr.bf16.mxu0 0
    %412 = vmatpush1.bf16.msra.mxu0 %v343
    %413 = vmatprep.subr.bf16.mxu0 0
    %414 = vmatpush1.bf16.msra.mxu0 %v340
    %415 = vmatprep.subr.bf16.mxu0 0
    %416 = vmatpush1.bf16.msra.mxu0 %v337
    %417 = vmatprep.subr.bf16.mxu0 0
    %418 = vmatpush1.bf16.msra.mxu0 %v334
    %419 = vmatprep.subr.bf16.mxu0 0
    %420 = vmatpush1.bf16.msra.mxu0 %v331
    %421 = vmatprep.subr.bf16.mxu0 0
    %422 = vmatpush1.bf16.msra.mxu0 %v328
    %423 = vmatprep.subr.bf16.mxu0 0
    %424 = vmatpush1.bf16.msra.mxu0 %v325
    %425 = vmatprep.subr.bf16.mxu0 0
    %426 = vmatpush1.bf16.msra.mxu0 %v322
    %427 = vmatprep.subr.bf16.mxu0 0
    %428 = vmatpush2.bf16.msra.mxu0 0
    %429 = vmatprep.subr.bf16.mxu0 0
    %430 = vmatpush2.bf16.msra.mxu0 0
    %431 = vmatprep.subr.bf16.mxu0 0
    %432 = vmatpush2.bf16.msra.mxu0 0
    %433 = vmatprep.subr.bf16.mxu0 0
    %434 = vmatpush2.bf16.msra.mxu0 0
    %435 = vmatprep.subr.bf16.mxu0 0
    %436 = vmatpush2.bf16.msra.mxu0 0
    %437 = vmatprep.subr.bf16.mxu0 0
    %438 = vmatpush2.bf16.msra.mxu0 0
    %439 = vmatprep.subr.bf16.mxu0 0
    %440 = vmatpush2.bf16.msra.mxu0 0
    %441 = vmatprep.subr.bf16.mxu0 0
    %442 = vmatpush2.bf16.msra.mxu0 0
    %443 = vmatprep.mubr.bf16.mxu0 0
    %444 = vmatmul.mubr.bf16.gmra.mxu0 %v207
    %v445 = vpop.f32.mrf.mxu0
    %v446 = vadd.f32 0.0, %v445
    %v447 = vpop.f32.mrf.mxu0
    %v448 = vpop.f32.mrf.mxu0
    %v449 = vadd.f32 0.0, %v448
    %v450 = vpop.f32.mrf.mxu0
    %451 = vdwg.mxu0
    %vm452 = vcmp.eq.f32.partialorder %v403, 0.0
    %vm453 = vcmp.eq.f32.partialorder %v407, 0.0
    %vm454 = vmand %vm452, %vm172
    %vm455 = vmand %vm453, %vm172
    %v456 = vsel %vm454, 1e-06, %v403
    %v457 = vsel %vm455, 1e-06, %v407
    %vm458 = vcmp.eq.f32.partialorder %v405, 0.0
    %vm459 = vcmp.eq.f32.partialorder %v409, 0.0
    %vm460 = vmand %vm458, %vm172
    %vm461 = vmand %vm459, %vm172
    %v462 = vsel %vm460, 1e-06, %v405
    %v463 = vsel %vm461, 1e-06, %v409
    %v464 = vmul.f32 %v456, %v456
    %v465 = vmul.f32 %v457, %v457
    %466 = vadd.xlane.f32.xlu0 %v464
    %v467 = vpop.xlane.xlu0 %466
    %468 = vadd.xlane.f32.xlu0 %v465
    %v469 = vpop.xlane.xlu0 %468
    %v470 = vrsqrt.pop %v467
    %v471 = vrsqrt.pop %v469
    %v472 = vmul.f32 %v456, %v470
    %v473 = vmul.f32 %v457, %v471
    %v474 = vmul.f32 %v462, %v462
    %v475 = vmul.f32 %v463, %v463
    %476 = vadd.xlane.f32.xlu0 %v474
    %v477 = vpop.xlane.xlu0 %476
    %478 = vadd.xlane.f32.xlu0 %v475
    %v479 = vpop.xlane.xlu0 %478
    %v480 = vrsqrt.pop %v477
    %v481 = vrsqrt.pop %v479
    %v482 = vmul.f32 %v462, %v480
    %v483 = vmul.f32 %v463, %v481
    %v484 = vpack.c.bf16 %v483, %v482
    %v485 = vpack.c.bf16 %v449, %v446
    %486 = vxpose.xlu0.c.b16.start [1/8] %v484, 128
    %487 = vxpose.xlu0.c.b16.cont [2/8] 0, 128
    %488 = vxpose.xlu0.c.b16.cont [3/8] 0, 128
    %489 = vxpose.xlu0.c.b16.cont [4/8] 0, 128
    %490 = vxpose.xlu0.c.b16.cont [5/8] 0, 128
    %491 = vxpose.xlu0.c.b16.cont [6/8] 0, 128
    %492 = vxpose.xlu0.c.b16.cont [7/8] 0, 128
    %493 = vxpose.xlu0.c.b16.end [8/8] 0, 128
    %v494 = vpop.trf.xlu0
    %v495 = vpop.trf.xlu0
    %v496 = vpop.trf.xlu0
    %v497 = vpop.trf.xlu0
    %v498 = vpop.trf.xlu0
    %v499 = vpop.trf.xlu0
    %v500 = vpop.trf.xlu0
    %v501 = vpop.trf.xlu0
    %vm502 = vcmask 130048
    %v504 = vsel %vm502, %v494, 0
    %v507 = vsel %vm502, %v495, 0
    %v510 = vsel %vm502, %v496, 0
    %v513 = vsel %vm502, %v497, 0
    %v516 = vsel %vm502, %v498, 0
    %v519 = vsel %vm502, %v499, 0
    %v522 = vsel %vm502, %v500, 0
    %v525 = vsel %vm502, %v501, 0
    %527 = vmatprep.subr.bf16.mxu0 0
    %528 = vmatpush1.bf16.msra.mxu0 0
    %529 = vmatprep.subr.bf16.mxu0 0
    %530 = vmatpush1.bf16.msra.mxu0 0
    %531 = vmatprep.subr.bf16.mxu0 0
    %532 = vmatpush1.bf16.msra.mxu0 0
    %533 = vmatprep.subr.bf16.mxu0 0
    %534 = vmatpush1.bf16.msra.mxu0 0
    %535 = vmatprep.subr.bf16.mxu0 0
    %536 = vmatpush1.bf16.msra.mxu0 0
    %537 = vmatprep.subr.bf16.mxu0 0
    %538 = vmatpush1.bf16.msra.mxu0 0
    %539 = vmatprep.subr.bf16.mxu0 0
    %540 = vmatpush1.bf16.msra.mxu0 0
    %541 = vmatprep.subr.bf16.mxu0 0
    %542 = vmatpush1.bf16.msra.mxu0 %v485
    %543 = vmatprep.subr.bf16.mxu0 0
    %544 = vmatpush2.bf16.msra.mxu0 0
    %545 = vmatprep.subr.bf16.mxu0 0
    %546 = vmatpush2.bf16.msra.mxu0 0
    %547 = vmatprep.subr.bf16.mxu0 0
    %548 = vmatpush2.bf16.msra.mxu0 0
    %549 = vmatprep.subr.bf16.mxu0 0
    %550 = vmatpush2.bf16.msra.mxu0 0
    %551 = vmatprep.subr.bf16.mxu0 0
    %552 = vmatpush2.bf16.msra.mxu0 0
    %553 = vmatprep.subr.bf16.mxu0 0
    %554 = vmatpush2.bf16.msra.mxu0 0
    %555 = vmatprep.subr.bf16.mxu0 0
    %556 = vmatpush2.bf16.msra.mxu0 0
    %557 = vmatprep.subr.bf16.mxu0 0
    %558 = vmatpush2.bf16.msra.mxu0 0
    %559 = vmatprep.mubr.bf16.mxu0 0
    %560 = vmatmul.mubr.bf16.gmra.mxu0 %v504
    %v561 = vpop.f32.mrf.mxu0
    %v562 = vadd.f32 0.0, %v561
    %v563 = vpop.f32.mrf.mxu0
    %v564 = vpop.f32.mrf.mxu0
    %v565 = vadd.f32 0.0, %v564
    %v566 = vpop.f32.mrf.mxu0
    %567 = vmatprep.mubr.bf16.mxu0 0
    %568 = vmatmul.mubr.bf16.gmra.mxu0 %v507
    %v569 = vpop.f32.mrf.mxu0
    %v570 = vadd.f32 0.0, %v569
    %v571 = vpop.f32.mrf.mxu0
    %v572 = vpop.f32.mrf.mxu0
    %v573 = vadd.f32 0.0, %v572
    %v574 = vpop.f32.mrf.mxu0
    %575 = vmatprep.mubr.bf16.mxu0 0
    %576 = vmatmul.mubr.bf16.gmra.mxu0 %v510
    %v577 = vpop.f32.mrf.mxu0
    %v578 = vadd.f32 0.0, %v577
    %v579 = vpop.f32.mrf.mxu0
    %v580 = vpop.f32.mrf.mxu0
    %v581 = vadd.f32 0.0, %v580
    %v582 = vpop.f32.mrf.mxu0
    %583 = vmatprep.mubr.bf16.mxu0 0
    %584 = vmatmul.mubr.bf16.gmra.mxu0 %v513
    %v585 = vpop.f32.mrf.mxu0
    %v586 = vadd.f32 0.0, %v585
    %v587 = vpop.f32.mrf.mxu0
    %v588 = vpop.f32.mrf.mxu0
    %v589 = vadd.f32 0.0, %v588
    %v590 = vpop.f32.mrf.mxu0
    %591 = vmatprep.mubr.bf16.mxu0 0
    %592 = vmatmul.mubr.bf16.gmra.mxu0 %v516
    %v593 = vpop.f32.mrf.mxu0
    %v594 = vadd.f32 0.0, %v593
    %v595 = vpop.f32.mrf.mxu0
    %v596 = vpop.f32.mrf.mxu0
    %v597 = vadd.f32 0.0, %v596
    %v598 = vpop.f32.mrf.mxu0
    %599 = vmatprep.mubr.bf16.mxu0 0
    %600 = vmatmul.mubr.bf16.gmra.mxu0 %v519
    %v601 = vpop.f32.mrf.mxu0
    %v602 = vadd.f32 0.0, %v601
    %v603 = vpop.f32.mrf.mxu0
    %v604 = vpop.f32.mrf.mxu0
    %v605 = vadd.f32 0.0, %v604
    %v606 = vpop.f32.mrf.mxu0
    %607 = vmatprep.mubr.bf16.mxu0 0
    %608 = vmatmul.mubr.bf16.gmra.mxu0 %v522
    %v609 = vpop.f32.mrf.mxu0
    %v610 = vadd.f32 0.0, %v609
    %v611 = vpop.f32.mrf.mxu0
    %v612 = vpop.f32.mrf.mxu0
    %v613 = vadd.f32 0.0, %v612
    %v614 = vpop.f32.mrf.mxu0
    %615 = vmatprep.mubr.bf16.mxu0 0
    %616 = vmatmul.mubr.bf16.gmra.mxu0 %v525
    %v617 = vpop.f32.mrf.mxu0
    %v618 = vadd.f32 0.0, %v617
    %v619 = vpop.f32.mrf.mxu0
    %v620 = vpop.f32.mrf.mxu0
    %v621 = vadd.f32 0.0, %v620
    %v622 = vpop.f32.mrf.mxu0
    %623 = vdwg.mxu0
    %v624 = vpack.c.bf16 %v473, %v472
    %v625 = vpack.c.bf16 %v565, %v562
    %v626 = vpack.c.bf16 %v573, %v570
    %v627 = vpack.c.bf16 %v581, %v578
    %v628 = vpack.c.bf16 %v589, %v586
    %v629 = vpack.c.bf16 %v597, %v594
    %v630 = vpack.c.bf16 %v605, %v602
    %v631 = vpack.c.bf16 %v613, %v610
    %v632 = vpack.c.bf16 %v621, %v618
    %v633 = vmul.f32 %v446, 16.0
    %v634 = vmul.f32 %v449, 16.0
    %635 = vmatprep.subr.bf16.mxu0 0
    %636 = vmatpush1.bf16.msra.mxu0 %v632
    %637 = vmatprep.subr.bf16.mxu0 0
    %638 = vmatpush1.bf16.msra.mxu0 %v631
    %639 = vmatprep.subr.bf16.mxu0 0
    %640 = vmatpush1.bf16.msra.mxu0 %v630
    %641 = vmatprep.subr.bf16.mxu0 0
    %642 = vmatpush1.bf16.msra.mxu0 %v629
    %643 = vmatprep.subr.bf16.mxu0 0
    %644 = vmatpush1.bf16.msra.mxu0 %v628
    %645 = vmatprep.subr.bf16.mxu0 0
    %646 = vmatpush1.bf16.msra.mxu0 %v627
    %647 = vmatprep.subr.bf16.mxu0 0
    %648 = vmatpush1.bf16.msra.mxu0 %v626
    %649 = vmatprep.subr.bf16.mxu0 0
    %650 = vmatpush1.bf16.msra.mxu0 %v625
    %651 = vmatprep.subr.bf16.mxu0 0
    %652 = vmatpush2.bf16.msra.mxu0 0
    %653 = vmatprep.subr.bf16.mxu0 0
    %654 = vmatpush2.bf16.msra.mxu0 0
    %655 = vmatprep.subr.bf16.mxu0 0
    %656 = vmatpush2.bf16.msra.mxu0 0
    %657 = vmatprep.subr.bf16.mxu0 0
    %658 = vmatpush2.bf16.msra.mxu0 0
    %659 = vmatprep.subr.bf16.mxu0 0
    %660 = vmatpush2.bf16.msra.mxu0 0
    %661 = vmatprep.subr.bf16.mxu0 0
    %662 = vmatpush2.bf16.msra.mxu0 0
    %663 = vmatprep.subr.bf16.mxu0 0
    %664 = vmatpush2.bf16.msra.mxu0 0
    %665 = vmatprep.subr.bf16.mxu0 0
    %666 = vmatpush2.bf16.msra.mxu0 0
    %667 = vmatprep.mubr.bf16.mxu0 0
    %668 = vmatmul.mubr.bf16.gmra.mxu0 %v624
    %v669 = vpop.f32.mrf.mxu0
    %v670 = vadd.f32 %v633, %v669
    %v671 = vpop.f32.mrf.mxu0
    %v672 = vpop.f32.mrf.mxu0
    %v673 = vadd.f32 %v634, %v672
    %v674 = vpop.f32.mrf.mxu0
    %675 = vdwg.mxu0
    %v676 = vadd.f32 %v482, %v483
    %v677 = vrot.slane %v676, 4
    %v678 = vadd.f32 %v676, %v677
    %v679 = vrot.slane %v678, 2
    %v680 = vadd.f32 %v678, %v679
    %v681 = vrot.slane %v680, 1
    %v682 = vadd.f32 %v680, %v681
    %v683 = vmul.f32 %v472, %v682
    %v684 = vmul.f32 %v473, %v682
    %685 = vadd.xlane.f32.xlu0 %v683
    %v686 = vpop.xlane.xlu0 %685
    %687 = vadd.xlane.f32.xlu0 %v684
    %v688 = vpop.xlane.xlu0 %687
    %v689 = vadd.f32 %v686, 16.0
    %v690 = vadd.f32 %v688, 16.0
    %v691 = vrcp.pop %v689
    %v692 = vmul.f32 %v670, %v691
    %v693 = vrcp.pop %v690
    %v694 = vmul.f32 %v673, %v693
    %v695 = vadd.f32 %v692, %v205
    %v696 = vadd.f32 %v694, %v206
    %v697 = vmul.f32 %v695, 0.5
    %v698 = vmul.f32 %v696, 0.5
    %s699 = scalar_lea.vmem %s3, 1
    %v700 = vld [vmem:[%s699] sm:$0x1]
    %s701 = scalar_lea.vmem %s4, 1
    %v702 = vld [vmem:[%s701] sm:$0x1]
    %703 = vadd.xlane.f32.xlu0 %v697
    %v704 = vpop.xlane.xlu0 %703
    %705 = vadd.xlane.f32.xlu0 %v698
    %v706 = vpop.xlane.xlu0 %705
    %v707 = vmul.f32 %v704, 0.03125
    %v708 = vmul.f32 %v706, 0.03125
    %v709 = vsub.f32 %v697, %v707
    %v710 = vsub.f32 %v698, %v708
    %v711 = vsel %vm172, %v709, 0.0
    %v712 = vsel %vm172, %v710, 0.0
    %v713 = vmul.f32 %v711, %v711
    %v714 = vmul.f32 %v712, %v712
    %715 = vadd.xlane.f32.xlu0 %v713
    %v716 = vpop.xlane.xlu0 %715
    %717 = vadd.xlane.f32.xlu0 %v714
    %v718 = vpop.xlane.xlu0 %717
    %v719 = vmul.f32 %v716, 0.03125
    %v720 = vmul.f32 %v718, 0.03125
    %v721 = vadd.f32 %v719, 1e-05
    %v722 = vadd.f32 %v720, 1e-05
    %v723 = vrsqrt.pop %v721
    %v724 = vrsqrt.pop %v722
    %v725 = vmul.f32 %v711, %v723
    %v726 = vmul.f32 %v712, %v724
    %v728 = vlaneseq
    %v729 = vshrl.u32 %v728, 7
    %v730 = vsub.s32 0, %v729
    %v731 = vrot.slane %v700, %v730
    %v733 = vmul.f32 %v725, %v731
    %v734 = vmul.f32 %v726, %v731
    %v736 = vlaneseq
    %v737 = vshrl.u32 %v736, 7
    %v738 = vsub.s32 0, %v737
    %v739 = vrot.slane %v702, %v738
    %v741 = vadd.f32 %v733, %v739
    %v742 = vadd.f32 %v734, %v739
    %v743 = vmax.f32 %v741, 0.0
    %v744 = vmax.f32 %v742, 0.0
    %v745 = vpack.c.bf16 %v744, %v743
    %s746 = scalar_lea.vmem [#allocation2], 192
    %v747 = vld [vmem:[%s746] sm:$0xff]
    %v748 = vld [vmem:[%s746 + $0x8] sm:$0xf]
    %v749 = vld [vmem:[%s746 + $0xc] sm:$0xff]
    %v750 = vld [vmem:[%s746 + $0x14] sm:$0xf]
    %v751 = vld [vmem:[%s746 + $0x18] sm:$0xff]
    %v752 = vld [vmem:[%s746 + $0x20] sm:$0xf]
    %v753 = vld [vmem:[%s746 + $0x24] sm:$0xff]
    %v754 = vld [vmem:[%s746 + $0x2c] sm:$0xf]
    %v755 = vld [vmem:[%s746 + $0x30] sm:$0xff]
    %v756 = vld [vmem:[%s746 + $0x38] sm:$0xf]
    %v757 = vld [vmem:[%s746 + $0x3c] sm:$0xff]
    %v758 = vld [vmem:[%s746 + $0x44] sm:$0xf]
    %v759 = vld [vmem:[%s746 + $0x48] sm:$0xff]
    %v760 = vld [vmem:[%s746 + $0x50] sm:$0xf]
    %v761 = vld [vmem:[%s746 + $0x54] sm:$0xff]
    %v762 = vld [vmem:[%s746 + $0x5c] sm:$0xf]
    %v763 = vld [vmem:[%s746 + $0x60] sm:$0xff]
    %v764 = vld [vmem:[%s746 + $0x68] sm:$0xf]
    %v765 = vld [vmem:[%s746 + $0x6c] sm:$0xff]
    %v766 = vld [vmem:[%s746 + $0x74] sm:$0xf]
    %v767 = vld [vmem:[%s746 + $0x78] sm:$0xff]
    %v768 = vld [vmem:[%s746 + $0x80] sm:$0xf]
    %v769 = vld [vmem:[%s746 + $0x84] sm:$0xff]
    %v770 = vld [vmem:[%s746 + $0x8c] sm:$0xf]
    %v771 = vld [vmem:[%s746 + $0x90] sm:$0xff]
    %v772 = vld [vmem:[%s746 + $0x98] sm:$0xf]
    %v773 = vld [vmem:[%s746 + $0x9c] sm:$0xff]
    %v774 = vld [vmem:[%s746 + $0xa4] sm:$0xf]
    %v775 = vld [vmem:[%s746 + $0xa8] sm:$0xff]
    %v776 = vld [vmem:[%s746 + $0xb0] sm:$0xf]
    %v777 = vld [vmem:[%s746 + $0xb4] sm:$0xff]
    %v778 = vld [vmem:[%s746 + $0xbc] sm:$0xf]
    %v811 = vunpack.c.l.b16 %v747
    %v812 = vunpack.c.h.b16 %v747
    %v813 = vunpack.c.l.b16 %v748
    %v814 = vunpack.c.l.b16 %v749
    %v815 = vunpack.c.h.b16 %v749
    %v816 = vunpack.c.l.b16 %v750
    %v817 = vunpack.c.l.b16 %v751
    %v818 = vunpack.c.h.b16 %v751
    %v819 = vunpack.c.l.b16 %v752
    %v820 = vunpack.c.l.b16 %v753
    %v821 = vunpack.c.h.b16 %v753
    %v822 = vunpack.c.l.b16 %v754
    %v823 = vunpack.c.l.b16 %v755
    %v824 = vunpack.c.h.b16 %v755
    %v825 = vunpack.c.l.b16 %v756
    %v826 = vunpack.c.l.b16 %v757
    %v827 = vunpack.c.h.b16 %v757
    %v828 = vunpack.c.l.b16 %v758
    %v829 = vunpack.c.l.b16 %v759
    %v830 = vunpack.c.h.b16 %v759
    %v831 = vunpack.c.l.b16 %v760
    %v832 = vunpack.c.l.b16 %v761
    %v833 = vunpack.c.h.b16 %v761
    %v834 = vunpack.c.l.b16 %v762
    %v835 = vunpack.c.l.b16 %v763
    %v836 = vunpack.c.h.b16 %v763
    %v837 = vunpack.c.l.b16 %v764
    %v838 = vunpack.c.l.b16 %v765
    %v839 = vunpack.c.h.b16 %v765
    %v840 = vunpack.c.l.b16 %v766
    %v841 = vunpack.c.l.b16 %v767
    %v842 = vunpack.c.h.b16 %v767
    %v843 = vunpack.c.l.b16 %v768
    %v844 = vunpack.c.l.b16 %v769
    %v845 = vunpack.c.h.b16 %v769
    %v846 = vunpack.c.l.b16 %v770
    %v847 = vunpack.c.l.b16 %v771
    %v848 = vunpack.c.h.b16 %v771
    %v849 = vunpack.c.l.b16 %v772
    %v850 = vunpack.c.l.b16 %v773
    %v851 = vunpack.c.h.b16 %v773
    %v852 = vunpack.c.l.b16 %v774
    %v853 = vunpack.c.l.b16 %v775
    %v854 = vunpack.c.h.b16 %v775
    %v855 = vunpack.c.l.b16 %v776
    %v856 = vunpack.c.l.b16 %v777
    %v857 = vunpack.c.h.b16 %v777
    %v858 = vunpack.c.l.b16 %v778
    %v859 = vpack.c.b16 %v814, %v811
    %v860 = vpack.c.b16 %v815, %v812
    %v861 = vpack.c.b16 %v816, %v813
    %v862 = vpack.c.b16 %v820, %v817
    %v863 = vpack.c.b16 %v821, %v818
    %v864 = vpack.c.b16 %v822, %v819
    %v865 = vpack.c.b16 %v826, %v823
    %v866 = vpack.c.b16 %v827, %v824
    %v867 = vpack.c.b16 %v828, %v825
    %v868 = vpack.c.b16 %v832, %v829
    %v869 = vpack.c.b16 %v833, %v830
    %v870 = vpack.c.b16 %v834, %v831
    %v871 = vpack.c.b16 %v838, %v835
    %v872 = vpack.c.b16 %v839, %v836
    %v873 = vpack.c.b16 %v840, %v837
    %v874 = vpack.c.b16 %v844, %v841
    %v875 = vpack.c.b16 %v845, %v842
    %v876 = vpack.c.b16 %v846, %v843
    %v877 = vpack.c.b16 %v850, %v847
    %v878 = vpack.c.b16 %v851, %v848
    %v879 = vpack.c.b16 %v852, %v849
    %v880 = vpack.c.b16 %v856, %v853
    %v881 = vpack.c.b16 %v857, %v854
    %v882 = vpack.c.b16 %v858, %v855
    %907 = vmatprep.subr.bf16.mxu0 %v881
    %908 = vmatpush1.bf16.msra.mxu0 %v880
    %909 = vmatprep.subr.bf16.mxu0 %v878
    %910 = vmatpush1.bf16.msra.mxu0 %v877
    %911 = vmatprep.subr.bf16.mxu0 %v875
    %912 = vmatpush1.bf16.msra.mxu0 %v874
    %913 = vmatprep.subr.bf16.mxu0 %v872
    %914 = vmatpush1.bf16.msra.mxu0 %v871
    %915 = vmatprep.subr.bf16.mxu0 %v869
    %916 = vmatpush1.bf16.msra.mxu0 %v868
    %917 = vmatprep.subr.bf16.mxu0 %v866
    %918 = vmatpush1.bf16.msra.mxu0 %v865
    %919 = vmatprep.subr.bf16.mxu0 %v863
    %920 = vmatpush1.bf16.msra.mxu0 %v862
    %921 = vmatprep.subr.bf16.mxu0 %v860
    %922 = vmatpush1.bf16.msra.mxu0 %v859
    %923 = vmatprep.subr.bf16.mxu0 0
    %924 = vmatpush2.bf16.msra.mxu0 0
    %925 = vmatprep.subr.bf16.mxu0 0
    %926 = vmatpush2.bf16.msra.mxu0 0
    %927 = vmatprep.subr.bf16.mxu0 0
    %928 = vmatpush2.bf16.msra.mxu0 0
    %929 = vmatprep.subr.bf16.mxu0 0
    %930 = vmatpush2.bf16.msra.mxu0 0
    %931 = vmatprep.subr.bf16.mxu0 0
    %932 = vmatpush2.bf16.msra.mxu0 0
    %933 = vmatprep.subr.bf16.mxu0 0
    %934 = vmatpush2.bf16.msra.mxu0 0
    %935 = vmatprep.subr.bf16.mxu0 0
    %936 = vmatpush2.bf16.msra.mxu0 0
    %937 = vmatprep.subr.bf16.mxu0 0
    %938 = vmatpush2.bf16.msra.mxu0 0
    %939 = vmatprep.mubr.bf16.mxu0 0
    %940 = vmatmul.mubr.bf16.gmra.mxu0 %v745
    %v941 = vpop.f32.mrf.mxu0
    %v942 = vadd.f32 0.0, %v941
    %v943 = vpop.f32.mrf.mxu0
    %v944 = vadd.f32 0.0, %v943
    %v945 = vpop.f32.mrf.mxu0
    %v946 = vadd.f32 0.0, %v945
    %v947 = vpop.f32.mrf.mxu0
    %v948 = vadd.f32 0.0, %v947
    %949 = vdwg.mxu0
    %950 = vmatprep.subr.bf16.mxu0 0
    %951 = vmatpush1.bf16.msra.mxu0 %v882
    %952 = vmatprep.subr.bf16.mxu0 0
    %953 = vmatpush1.bf16.msra.mxu0 %v879
    %954 = vmatprep.subr.bf16.mxu0 0
    %955 = vmatpush1.bf16.msra.mxu0 %v876
    %956 = vmatprep.subr.bf16.mxu0 0
    %957 = vmatpush1.bf16.msra.mxu0 %v873
    %958 = vmatprep.subr.bf16.mxu0 0
    %959 = vmatpush1.bf16.msra.mxu0 %v870
    %960 = vmatprep.subr.bf16.mxu0 0
    %961 = vmatpush1.bf16.msra.mxu0 %v867
    %962 = vmatprep.subr.bf16.mxu0 0
    %963 = vmatpush1.bf16.msra.mxu0 %v864
    %964 = vmatprep.subr.bf16.mxu0 0
    %965 = vmatpush1.bf16.msra.mxu0 %v861
    %966 = vmatprep.subr.bf16.mxu0 0
    %967 = vmatpush2.bf16.msra.mxu0 0
    %968 = vmatprep.subr.bf16.mxu0 0
    %969 = vmatpush2.bf16.msra.mxu0 0
    %970 = vmatprep.subr.bf16.mxu0 0
    %971 = vmatpush2.bf16.msra.mxu0 0
    %972 = vmatprep.subr.bf16.mxu0 0
    %973 = vmatpush2.bf16.msra.mxu0 0
    %974 = vmatprep.subr.bf16.mxu0 0
    %975 = vmatpush2.bf16.msra.mxu0 0
    %976 = vmatprep.subr.bf16.mxu0 0
    %977 = vmatpush2.bf16.msra.mxu0 0
    %978 = vmatprep.subr.bf16.mxu0 0
    %979 = vmatpush2.bf16.msra.mxu0 0
    %980 = vmatprep.subr.bf16.mxu0 0
    %981 = vmatpush2.bf16.msra.mxu0 0
    %982 = vmatprep.mubr.bf16.mxu0 0
    %983 = vmatmul.mubr.bf16.gmra.mxu0 %v745
    %v984 = vpop.f32.mrf.mxu0
    %v985 = vadd.f32 0.0, %v984
    %v986 = vpop.f32.mrf.mxu0
    %v987 = vpop.f32.mrf.mxu0
    %v988 = vadd.f32 0.0, %v987
    %v989 = vpop.f32.mrf.mxu0
    %990 = vdwg.mxu0
    %vm991 = vcmp.eq.f32.partialorder %v942, 0.0
    %vm992 = vcmp.eq.f32.partialorder %v946, 0.0
    %vm993 = vmand %vm991, %vm172
    %vm994 = vmand %vm992, %vm172
    %v995 = vsel %vm993, 1e-06, %v942
    %v996 = vsel %vm994, 1e-06, %v946
    %vm997 = vcmp.eq.f32.partialorder %v944, 0.0
    %vm998 = vcmp.eq.f32.partialorder %v948, 0.0
    %vm999 = vmand %vm997, %vm172
    %vm1000 = vmand %vm998, %vm172
    %v1001 = vsel %vm999, 1e-06, %v944
    %v1002 = vsel %vm1000, 1e-06, %v948
    %v1003 = vmul.f32 %v995, %v995
    %v1004 = vmul.f32 %v996, %v996
    %1005 = vadd.xlane.f32.xlu0 %v1003
    %v1006 = vpop.xlane.xlu0 %1005
    %1007 = vadd.xlane.f32.xlu0 %v1004
    %v1008 = vpop.xlane.xlu0 %1007
    %v1009 = vrsqrt.pop %v1006
    %v1010 = vrsqrt.pop %v1008
    %v1011 = vmul.f32 %v995, %v1009
    %v1012 = vmul.f32 %v996, %v1010
    %v1013 = vmul.f32 %v1001, %v1001
    %v1014 = vmul.f32 %v1002, %v1002
    %1015 = vadd.xlane.f32.xlu0 %v1013
    %v1016 = vpop.xlane.xlu0 %1015
    %1017 = vadd.xlane.f32.xlu0 %v1014
    %v1018 = vpop.xlane.xlu0 %1017
    %v1019 = vrsqrt.pop %v1016
    %v1020 = vrsqrt.pop %v1018
    %v1021 = vmul.f32 %v1001, %v1019
    %v1022 = vmul.f32 %v1002, %v1020
    %v1023 = vpack.c.bf16 %v1022, %v1021
    %v1024 = vpack.c.bf16 %v988, %v985
    %1025 = vxpose.xlu0.c.b16.start [1/8] %v1023, 128
    %1026 = vxpose.xlu0.c.b16.cont [2/8] 0, 128
    %1027 = vxpose.xlu0.c.b16.cont [3/8] 0, 128
    %1028 = vxpose.xlu0.c.b16.cont [4/8] 0, 128
    %1029 = vxpose.xlu0.c.b16.cont [5/8] 0, 128
    %1030 = vxpose.xlu0.c.b16.cont [6/8] 0, 128
    %1031 = vxpose.xlu0.c.b16.cont [7/8] 0, 128
    %1032 = vxpose.xlu0.c.b16.end [8/8] 0, 128
    %v1033 = vpop.trf.xlu0
    %v1034 = vpop.trf.xlu0
    %v1035 = vpop.trf.xlu0
    %v1036 = vpop.trf.xlu0
    %v1037 = vpop.trf.xlu0
    %v1038 = vpop.trf.xlu0
    %v1039 = vpop.trf.xlu0
    %v1040 = vpop.trf.xlu0
    %v1042 = vsel %vm502, %v1033, 0
    %v1045 = vsel %vm502, %v1034, 0
    %v1048 = vsel %vm502, %v1035, 0
    %v1051 = vsel %vm502, %v1036, 0
    %v1054 = vsel %vm502, %v1037, 0
    %v1057 = vsel %vm502, %v1038, 0
    %v1060 = vsel %vm502, %v1039, 0
    %v1063 = vsel %vm502, %v1040, 0
    %1065 = vmatprep.subr.bf16.mxu0 0
    %1066 = vmatpush1.bf16.msra.mxu0 0
    %1067 = vmatprep.subr.bf16.mxu0 0
    %1068 = vmatpush1.bf16.msra.mxu0 0
    %1069 = vmatprep.subr.bf16.mxu0 0
    %1070 = vmatpush1.bf16.msra.mxu0 0
    %1071 = vmatprep.subr.bf16.mxu0 0
    %1072 = vmatpush1.bf16.msra.mxu0 0
    %1073 = vmatprep.subr.bf16.mxu0 0
    %1074 = vmatpush1.bf16.msra.mxu0 0
    %1075 = vmatprep.subr.bf16.mxu0 0
    %1076 = vmatpush1.bf16.msra.mxu0 0
    %1077 = vmatprep.subr.bf16.mxu0 0
    %1078 = vmatpush1.bf16.msra.mxu0 0
    %1079 = vmatprep.subr.bf16.mxu0 0
    %1080 = vmatpush1.bf16.msra.mxu0 %v1024
    %1081 = vmatprep.subr.bf16.mxu0 0
    %1082 = vmatpush2.bf16.msra.mxu0 0
    %1083 = vmatprep.subr.bf16.mxu0 0
    %1084 = vmatpush2.bf16.msra.mxu0 0
    %1085 = vmatprep.subr.bf16.mxu0 0
    %1086 = vmatpush2.bf16.msra.mxu0 0
    %1087 = vmatprep.subr.bf16.mxu0 0
    %1088 = vmatpush2.bf16.msra.mxu0 0
    %1089 = vmatprep.subr.bf16.mxu0 0
    %1090 = vmatpush2.bf16.msra.mxu0 0
    %1091 = vmatprep.subr.bf16.mxu0 0
    %1092 = vmatpush2.bf16.msra.mxu0 0
    %1093 = vmatprep.subr.bf16.mxu0 0
    %1094 = vmatpush2.bf16.msra.mxu0 0
    %1095 = vmatprep.subr.bf16.mxu0 0
    %1096 = vmatpush2.bf16.msra.mxu0 0
    %1097 = vmatprep.mubr.bf16.mxu0 0
    %1098 = vmatmul.mubr.bf16.gmra.mxu0 %v1042
    %v1099 = vpop.f32.mrf.mxu0
    %v1100 = vadd.f32 0.0, %v1099
    %v1101 = vpop.f32.mrf.mxu0
    %v1102 = vpop.f32.mrf.mxu0
    %v1103 = vadd.f32 0.0, %v1102
    %v1104 = vpop.f32.mrf.mxu0
    %1105 = vmatprep.mubr.bf16.mxu0 0
    %1106 = vmatmul.mubr.bf16.gmra.mxu0 %v1045
    %v1107 = vpop.f32.mrf.mxu0
    %v1108 = vadd.f32 0.0, %v1107
    %v1109 = vpop.f32.mrf.mxu0
    %v1110 = vpop.f32.mrf.mxu0
    %v1111 = vadd.f32 0.0, %v1110
    %v1112 = vpop.f32.mrf.mxu0
    %1113 = vmatprep.mubr.bf16.mxu0 0
    %1114 = vmatmul.mubr.bf16.gmra.mxu0 %v1048
    %v1115 = vpop.f32.mrf.mxu0
    %v1116 = vadd.f32 0.0, %v1115
    %v1117 = vpop.f32.mrf.mxu0
    %v1118 = vpop.f32.mrf.mxu0
    %v1119 = vadd.f32 0.0, %v1118
    %v1120 = vpop.f32.mrf.mxu0
    %1121 = vmatprep.mubr.bf16.mxu0 0
    %1122 = vmatmul.mubr.bf16.gmra.mxu0 %v1051
    %v1123 = vpop.f32.mrf.mxu0
    %v1124 = vadd.f32 0.0, %v1123
    %v1125 = vpop.f32.mrf.mxu0
    %v1126 = vpop.f32.mrf.mxu0
    %v1127 = vadd.f32 0.0, %v1126
    %v1128 = vpop.f32.mrf.mxu0
    %1129 = vmatprep.mubr.bf16.mxu0 0
    %1130 = vmatmul.mubr.bf16.gmra.mxu0 %v1054
    %v1131 = vpop.f32.mrf.mxu0
    %v1132 = vadd.f32 0.0, %v1131
    %v1133 = vpop.f32.mrf.mxu0
    %v1134 = vpop.f32.mrf.mxu0
    %v1135 = vadd.f32 0.0, %v1134
    %v1136 = vpop.f32.mrf.mxu0
    %1137 = vmatprep.mubr.bf16.mxu0 0
    %1138 = vmatmul.mubr.bf16.gmra.mxu0 %v1057
    %v1139 = vpop.f32.mrf.mxu0
    %v1140 = vadd.f32 0.0, %v1139
    %v1141 = vpop.f32.mrf.mxu0
    %v1142 = vpop.f32.mrf.mxu0
    %v1143 = vadd.f32 0.0, %v1142
    %v1144 = vpop.f32.mrf.mxu0
    %1145 = vmatprep.mubr.bf16.mxu0 0
    %1146 = vmatmul.mubr.bf16.gmra.mxu0 %v1060
    %v1147 = vpop.f32.mrf.mxu0
    %v1148 = vadd.f32 0.0, %v1147
    %v1149 = vpop.f32.mrf.mxu0
    %v1150 = vpop.f32.mrf.mxu0
    %v1151 = vadd.f32 0.0, %v1150
    %v1152 = vpop.f32.mrf.mxu0
    %1153 = vmatprep.mubr.bf16.mxu0 0
    %1154 = vmatmul.mubr.bf16.gmra.mxu0 %v1063
    %v1155 = vpop.f32.mrf.mxu0
    %v1156 = vadd.f32 0.0, %v1155
    %v1157 = vpop.f32.mrf.mxu0
    %v1158 = vpop.f32.mrf.mxu0
    %v1159 = vadd.f32 0.0, %v1158
    %v1160 = vpop.f32.mrf.mxu0
    %1161 = vdwg.mxu0
    %v1162 = vpack.c.bf16 %v1012, %v1011
    %v1163 = vpack.c.bf16 %v1103, %v1100
    %v1164 = vpack.c.bf16 %v1111, %v1108
    %v1165 = vpack.c.bf16 %v1119, %v1116
    %v1166 = vpack.c.bf16 %v1127, %v1124
    %v1167 = vpack.c.bf16 %v1135, %v1132
    %v1168 = vpack.c.bf16 %v1143, %v1140
    %v1169 = vpack.c.bf16 %v1151, %v1148
    %v1170 = vpack.c.bf16 %v1159, %v1156
    %v1171 = vmul.f32 %v985, 16.0
    %v1172 = vmul.f32 %v988, 16.0
    %1173 = vmatprep.subr.bf16.mxu0 0
    %1174 = vmatpush1.bf16.msra.mxu0 %v1170
    %1175 = vmatprep.subr.bf16.mxu0 0
    %1176 = vmatpush1.bf16.msra.mxu0 %v1169
    %1177 = vmatprep.subr.bf16.mxu0 0
    %1178 = vmatpush1.bf16.msra.mxu0 %v1168
    %1179 = vmatprep.subr.bf16.mxu0 0
    %1180 = vmatpush1.bf16.msra.mxu0 %v1167
    %1181 = vmatprep.subr.bf16.mxu0 0
    %1182 = vmatpush1.bf16.msra.mxu0 %v1166
    %1183 = vmatprep.subr.bf16.mxu0 0
    %1184 = vmatpush1.bf16.msra.mxu0 %v1165
    %1185 = vmatprep.subr.bf16.mxu0 0
    %1186 = vmatpush1.bf16.msra.mxu0 %v1164
    %1187 = vmatprep.subr.bf16.mxu0 0
    %1188 = vmatpush1.bf16.msra.mxu0 %v1163
    %1189 = vmatprep.subr.bf16.mxu0 0
    %1190 = vmatpush2.bf16.msra.mxu0 0
    %1191 = vmatprep.subr.bf16.mxu0 0
    %1192 = vmatpush2.bf16.msra.mxu0 0
    %1193 = vmatprep.subr.bf16.mxu0 0
    %1194 = vmatpush2.bf16.msra.mxu0 0
    %1195 = vmatprep.subr.bf16.mxu0 0
    %1196 = vmatpush2.bf16.msra.mxu0 0
    %1197 = vmatprep.subr.bf16.mxu0 0
    %1198 = vmatpush2.bf16.msra.mxu0 0
    %1199 = vmatprep.subr.bf16.mxu0 0
    %1200 = vmatpush2.bf16.msra.mxu0 0
    %1201 = vmatprep.subr.bf16.mxu0 0
    %1202 = vmatpush2.bf16.msra.mxu0 0
    %1203 = vmatprep.subr.bf16.mxu0 0
    %1204 = vmatpush2.bf16.msra.mxu0 0
    %1205 = vmatprep.mubr.bf16.mxu0 0
    %1206 = vmatmul.mubr.bf16.gmra.mxu0 %v1162
    %v1207 = vpop.f32.mrf.mxu0
    %v1208 = vadd.f32 %v1171, %v1207
    %v1209 = vpop.f32.mrf.mxu0
    %v1210 = vpop.f32.mrf.mxu0
    %v1211 = vadd.f32 %v1172, %v1210
    %v1212 = vpop.f32.mrf.mxu0
    %1213 = vdwg.mxu0
    %v1214 = vadd.f32 %v1021, %v1022
    %v1215 = vrot.slane %v1214, 4
    %v1216 = vadd.f32 %v1214, %v1215
    %v1217 = vrot.slane %v1216, 2
    %v1218 = vadd.f32 %v1216, %v1217
    %v1219 = vrot.slane %v1218, 1
    %v1220 = vadd.f32 %v1218, %v1219
    %v1221 = vmul.f32 %v1011, %v1220
    %v1222 = vmul.f32 %v1012, %v1220
    %1223 = vadd.xlane.f32.xlu0 %v1221
    %v1224 = vpop.xlane.xlu0 %1223
    %1225 = vadd.xlane.f32.xlu0 %v1222
    %v1226 = vpop.xlane.xlu0 %1225
    %v1227 = vadd.f32 %v1224, 16.0
    %v1228 = vadd.f32 %v1226, 16.0
    %v1229 = vrcp.pop %v1227
    %v1230 = vmul.f32 %v1208, %v1229
    %v1231 = vrcp.pop %v1228
    %v1232 = vmul.f32 %v1211, %v1231
    %v1233 = vadd.f32 %v1230, %v743
    %v1234 = vadd.f32 %v1232, %v744
    %v1235 = vmul.f32 %v1233, 0.5
    %v1236 = vmul.f32 %v1234, 0.5
    %s1237 = scalar_lea.vmem %s3, 2
    %v1238 = vld [vmem:[%s1237] sm:$0x1]
    %s1239 = scalar_lea.vmem %s4, 2
    %v1240 = vld [vmem:[%s1239] sm:$0x1]
    %1241 = vadd.xlane.f32.xlu0 %v1235
    %v1242 = vpop.xlane.xlu0 %1241
    %1243 = vadd.xlane.f32.xlu0 %v1236
    %v1244 = vpop.xlane.xlu0 %1243
    %v1245 = vmul.f32 %v1242, 0.03125
    %v1246 = vmul.f32 %v1244, 0.03125
    %v1247 = vsub.f32 %v1235, %v1245
    %v1248 = vsub.f32 %v1236, %v1246
    %v1249 = vsel %vm172, %v1247, 0.0
    %v1250 = vsel %vm172, %v1248, 0.0
    %v1251 = vmul.f32 %v1249, %v1249
    %v1252 = vmul.f32 %v1250, %v1250
    %1253 = vadd.xlane.f32.xlu0 %v1251
    %v1254 = vpop.xlane.xlu0 %1253
    %1255 = vadd.xlane.f32.xlu0 %v1252
    %v1256 = vpop.xlane.xlu0 %1255
    %v1257 = vmul.f32 %v1254, 0.03125
    %v1258 = vmul.f32 %v1256, 0.03125
    %v1259 = vadd.f32 %v1257, 1e-05
    %v1260 = vadd.f32 %v1258, 1e-05
    %v1261 = vrsqrt.pop %v1259
    %v1262 = vrsqrt.pop %v1260
    %v1263 = vmul.f32 %v1249, %v1261
    %v1264 = vmul.f32 %v1250, %v1262
    %v1266 = vlaneseq
    %v1267 = vshrl.u32 %v1266, 7
    %v1268 = vsub.s32 0, %v1267
    %v1269 = vrot.slane %v1238, %v1268
    %v1271 = vmul.f32 %v1263, %v1269
    %v1272 = vmul.f32 %v1264, %v1269
    %v1274 = vlaneseq
    %v1275 = vshrl.u32 %v1274, 7
    %v1276 = vsub.s32 0, %v1275
    %v1277 = vrot.slane %v1240, %v1276
    %v1279 = vadd.f32 %v1271, %v1277
    %v1280 = vadd.f32 %v1272, %v1277
    %v1281 = vmax.f32 %v1279, 0.0
    %v1282 = vmax.f32 %v1280, 0.0
    %v1283 = vpack.c.bf16 %v1282, %v1281
    %v1285 = vunpack.c.l.b16 %v1283
    %v1286 = vunpack.c.h.b16 %v1283
    %v1287 = vpack.c.b16 %v1285, %v1285
    %v1288 = vpack.c.b16 %v1286, %v1286
    %1291 = vst [vmem:[%s6] sm:$0xf] %v1287
    %1292 = vst [vmem:[%s6 + $0x4] sm:$0xf] %v1288
    // Predicated region
    $region30: #{sgformer_forward.4} parent=1 // pred_check
      _
    $region31: #{sgformer_forward.4} parent=1 // pred_check_branch
      %1294 = sbr.rel (0) target = $region33
    $region32: #{sgformer_forward.4} parent=1 // pred_region
      _
    $region33: #{sgformer_forward.4} parent=1 // pred_fallthru
      _
    // Predicated region
    $region34: #{sgformer_forward.4} parent=1 // pred_check
      _
    $region35: #{sgformer_forward.4} parent=1 // pred_check_branch
      %1296 = sbr.rel (0) target = $region37
    $region36: #{sgformer_forward.4} parent=1 // pred_region
      _
    $region37: #{sgformer_forward.4} parent=1 // pred_fallthru
      _
    %1297 = vsyncpa [#allocation3], 1

</llo_original>
